<compile_context>
chip_gen: v7x
topology: tpu7x:2x2x1
jax: 0.10.0
libtpu: 0.0.40
codegen_flags: <defaults>
</compile_context>

<pallas_src>
import jax
import jax.numpy as jnp
from jax.experimental import pallas as pl
from jax.experimental.pallas import tpu as pltpu

BATCH_TILE = 128              # batch rows per grid step (MXU-sized; 256 also fine on v6e/v7x)
OUT_PAD = 128                 # lane-dense padded output width
MATMUL_DTYPE = jnp.bfloat16   # MXU operand dtype (accumulation stays float32)


def _elu(v):
    # PyTorch nn.ELU(alpha=1.0): x if x > 0 else exp(x) - 1
    return jnp.where(v > 0.0, v, jnp.exp(v) - 1.0)


def _dot(x, w):
    # bf16 operands into the MXU, f32 accumulation.
    return jnp.dot(x.astype(MATMUL_DTYPE), w.astype(MATMUL_DTYPE),
                   preferred_element_type=jnp.float32)


def actor_kernel(scan_ref, pose_ref, obs_ref,
                 wm_s, wm_p, bm,
                 w0a, w0b, b0, w1, b1, w2, b2, w3, b3,
                 o_ref):
    """Fused actor: mamba-stand-in projection + tanh, then (Linear->ELU)x3 -> Linear."""
    # latent = tanh([scandots_last | pose_last] @ Wm + bm), concat folded into split matmuls.
    latent = jnp.tanh(_dot(scan_ref[...], wm_s[...])
                      + _dot(pose_ref[...], wm_p[...]) + bm[...])
    # Layer 0 with the [latent | observations] concat folded into a split matmul.
    h = _elu(_dot(latent, w0a[...]) + _dot(obs_ref[...], w0b[...]) + b0[...])
    h = _elu(_dot(h, w1[...]) + b1[...])
    h = _elu(_dot(h, w2[...]) + b2[...])
    o_ref[...] = (_dot(h, w3[...]) + b3[...]).astype(o_ref.dtype)


def critic_kernel(x_ref, w0, b0, w1, b1, w2, b2, w3, b3, o_ref):
    """Fused critic MLP: (Linear -> ELU) x 3 -> Linear (output lane-padded)."""
    h = _elu(_dot(x_ref[...], w0[...]) + b0[...])
    h = _elu(_dot(h, w1[...]) + b1[...])
    h = _elu(_dot(h, w2[...]) + b2[...])
    o_ref[...] = (_dot(h, w3[...]) + b3[...]).astype(o_ref.dtype)


def _row_spec(feat):
    # Batch-tiled activation input.
    return pl.BlockSpec((BATCH_TILE, feat), lambda i: (i, 0))


def _full_spec(shape):
    # Block-invariant (weight / bias) input: full array, same block every step.
    zeros = (0,) * len(shape)
    return pl.BlockSpec(shape, lambda i: zeros)


def init_params(key, num_observations, num_privileged_obs, num_actions,
                hidden=(256, 256, 256), d_model=139, init_noise_std=1.0):
    """Kernel-ready synthetic parameters (torch nn.Linear default-style init).

    Weight matrices are stored [in, out] in MATMUL_DTYPE; biases as [1, out]
    float32. The last actor/critic layer is zero-padded to OUT_PAD lanes.
    """
    def linear(k, fan_in, fan_out):
        kw, kb = jax.random.split(k)
        bound = 1.0 / float(fan_in) ** 0.5
        w = jax.random.uniform(kw, (fan_in, fan_out), jnp.float32, -bound, bound)
        b = jax.random.uniform(kb, (1, fan_out), jnp.float32, -bound, bound)
        return w, b

    def pad_out(w, b):
        pad = OUT_PAD - w.shape[1]
        return jnp.pad(w, ((0, 0), (0, pad))), jnp.pad(b, ((0, 0), (0, pad)))

    keys = jax.random.split(key, 9)
    params = {"std": init_noise_std * jnp.ones((num_actions,), jnp.float32)}

    # Actor: Linear(7+num_obs,256) ELU Linear(256,256) ELU Linear(256,256) ELU Linear(256,A)
    a_dims = [7 + num_observations, hidden[0], hidden[1], hidden[2], num_actions]
    a_w, a_b = zip(*[linear(keys[i], a_dims[i], a_dims[i + 1]) for i in range(4)])
    w3p, b3p = pad_out(a_w[3], a_b[3])
    params.update(
        w0a=a_w[0][:7].astype(MATMUL_DTYPE),   # latent part of layer-0 weight
        w0b=a_w[0][7:].astype(MATMUL_DTYPE),   # observations part of layer-0 weight
        b0=a_b[0],
        w1=a_w[1].astype(MATMUL_DTYPE), b1=a_b[1],
        w2=a_w[2].astype(MATMUL_DTYPE), b2=a_b[2],
        w3p=w3p.astype(MATMUL_DTYPE), b3p=b3p,
    )

    # Critic: Linear(num_priv,256) ELU Linear(256,256) ELU Linear(256,256) ELU Linear(256,1)
    c_dims = [num_privileged_obs, hidden[0], hidden[1], hidden[2], 1]
    c_w, c_b = zip(*[linear(keys[4 + i], c_dims[i], c_dims[i + 1]) for i in range(4)])
    cw3p, cb3p = pad_out(c_w[3], c_b[3])
    params.update(
        cw0=c_w[0].astype(MATMUL_DTYPE), cb0=c_b[0],
        cw1=c_w[1].astype(MATMUL_DTYPE), cb1=c_b[1],
        cw2=c_w[2].astype(MATMUL_DTYPE), cb2=c_b[2],
        cw3p=cw3p.astype(MATMUL_DTYPE), cb3p=cb3p,
    )

    # Mamba stand-in projection d_model(139) -> 7, split into scandots / pose parts.
    wm, bm = linear(keys[8], d_model, 7)
    params.update(
        wm_s=wm[:d_model - 7].astype(MATMUL_DTYPE),
        wm_p=wm[d_model - 7:].astype(MATMUL_DTYPE),
        bm=bm,
    )
    return params


def actor_critic_rma_forward(params, scandots_history, obs_history, observations,
                             privileged_obs):
    """Mirror of ActorCriticRMA.forward(...): returns actions_mean [B, num_actions]."""
    del privileged_obs  # unused by forward() (matches the PyTorch reference)
    # TODO(synk): MyMambaModel/MyMambaConfig are not defined in the reference source;
    # stand in with a deterministic last-timestep linear projection d_model(139)->7 + tanh.
    scan_last = scandots_history[:, -1, :]     # [B, 132]
    pose_last = obs_history[:, -1, :7]         # [B, 7] pose_token at last timestep
    b = observations.shape[0]
    num_actions = params["std"].shape[0]

    weight_names = ("wm_s", "wm_p", "bm", "w0a", "w0b", "b0",
                    "w1", "b1", "w2", "b2", "w3p", "b3p")
    weight_args = [params[n] for n in weight_names]

    in_specs = [_row_spec(scan_last.shape[1]),
                _row_spec(pose_last.shape[1]),
                _row_spec(observations.shape[1])]
    in_specs += [_full_spec(w.shape) for w in weight_args]

    out = pl.pallas_call(
        actor_kernel,
        out_shape=jax.ShapeDtypeStruct((b, OUT_PAD), jnp.float32),
        grid=(pl.cdiv(b, BATCH_TILE),),
        in_specs=in_specs,
        out_specs=pl.BlockSpec((BATCH_TILE, OUT_PAD), lambda i: (i, 0)),
        compiler_params=pltpu.CompilerParams(dimension_semantics=("parallel",)),
    )(scan_last, pose_last, observations, *weight_args)
    return out[:, :num_actions]


def evaluate(params, critic_observations):
    """Mirror of ActorCriticRMA.evaluate -> value, shape [B, 1]."""
    b, feat = critic_observations.shape
    weight_names = ("cw0", "cb0", "cw1", "cb1", "cw2", "cb2", "cw3p", "cb3p")
    weight_args = [params[n] for n in weight_names]
    in_specs = [_row_spec(feat)] + [_full_spec(w.shape) for w in weight_args]

    out = pl.pallas_call(
        critic_kernel,
        out_shape=jax.ShapeDtypeStruct((b, OUT_PAD), jnp.float32),
        grid=(pl.cdiv(b, BATCH_TILE),),
        in_specs=in_specs,
        out_specs=pl.BlockSpec((BATCH_TILE, OUT_PAD), lambda i: (i, 0)),
        compiler_params=pltpu.CompilerParams(dimension_semantics=("parallel",)),
    )(critic_observations, *weight_args)
    return out[:, :1]


if __name__ == "__main__":
    B, T = 2, 8
    num_observations = 32
    num_privileged_obs = 48
    num_actions = 12
    scandots_dim = 132  # 132 + 7 pose dims = 139 = mamba d_model

    key = jax.random.PRNGKey(0)
    pkey, dkey = jax.random.split(key)
    params = init_params(pkey, num_observations, num_privileged_obs, num_actions)

    k1, k2, k3, k4 = jax.random.split(dkey, 4)
    scandots_history = jax.random.normal(k1, (B, T, scandots_dim), jnp.float32)
    obs_history = jax.random.normal(k2, (B, T, num_observations), jnp.float32)
    observations = jax.random.normal(k3, (B, num_observations), jnp.float32)
    privileged_obs = jax.random.normal(k4, (B, num_privileged_obs), jnp.float32)

    actions_mean = actor_critic_rma_forward(
        params, scandots_history, obs_history, observations, privileged_obs)
    value = evaluate(params, privileged_obs)

    jax.block_until_ready((actions_mean, value))
    assert actions_mean.shape == (B, num_actions)
    assert value.shape == (B, 1)
    print("KERNEL_OK")
</pallas_src>

<mosaic_0001>
module attributes {stable_mosaic.version = 11 : i64} {
  func.func @actor_kernel(%arg0: i32, %arg1: memref<128x132xf32, #tpu.memory_space<vmem>>, %arg2: memref<128x7xf32, #tpu.memory_space<vmem>>, %arg3: memref<128x32xf32, #tpu.memory_space<vmem>>, %arg4: memref<132x7xbf16, #tpu.memory_space<vmem>>, %arg5: memref<7x7xbf16, #tpu.memory_space<vmem>>, %arg6: memref<1x7xf32, #tpu.memory_space<vmem>>, %arg7: memref<7x256xbf16, #tpu.memory_space<vmem>>, %arg8: memref<32x256xbf16, #tpu.memory_space<vmem>>, %arg9: memref<1x256xf32, #tpu.memory_space<vmem>>, %arg10: memref<256x256xbf16, #tpu.memory_space<vmem>>, %arg11: memref<1x256xf32, #tpu.memory_space<vmem>>, %arg12: memref<256x256xbf16, #tpu.memory_space<vmem>>, %arg13: memref<1x256xf32, #tpu.memory_space<vmem>>, %arg14: memref<256x128xbf16, #tpu.memory_space<vmem>>, %arg15: memref<1x128xf32, #tpu.memory_space<vmem>>, %arg16: memref<128x128xf32, #tpu.memory_space<vmem>>) attributes {dimension_semantics = [#tpu.dimension_semantics<parallel>], iteration_bounds = array<i64: 1>, scalar_prefetch = 0 : i64, scratch_operands = 0 : i64, tpu.core_type = #tpu.core_type<tc>, window_params = [{transform_indices = @transform_0, window_bounds = array<i64: 128, 132>}, {transform_indices = @transform_1, window_bounds = array<i64: 128, 7>}, {transform_indices = @transform_2, window_bounds = array<i64: 128, 32>}, {pipeline_mode = #tpu.pipeline_mode<synchronous>, transform_indices = @transform_3, window_bounds = array<i64: 132, 7>}, {pipeline_mode = #tpu.pipeline_mode<synchronous>, transform_indices = @transform_4, window_bounds = array<i64: 7, 7>}, {pipeline_mode = #tpu.pipeline_mode<synchronous>, transform_indices = @transform_5, window_bounds = array<i64: 1, 7>}, {pipeline_mode = #tpu.pipeline_mode<synchronous>, transform_indices = @transform_6, window_bounds = array<i64: 7, 256>}, {pipeline_mode = #tpu.pipeline_mode<synchronous>, transform_indices = @transform_7, window_bounds = array<i64: 32, 256>}, {pipeline_mode = #tpu.pipeline_mode<synchronous>, transform_indices = @transform_8, window_bounds = array<i64: 1, 256>}, {pipeline_mode = #tpu.pipeline_mode<synchronous>, transform_indices = @transform_9, window_bounds = array<i64: 256, 256>}, {pipeline_mode = #tpu.pipeline_mode<synchronous>, transform_indices = @transform_10, window_bounds = array<i64: 1, 256>}, {pipeline_mode = #tpu.pipeline_mode<synchronous>, transform_indices = @transform_11, window_bounds = array<i64: 256, 256>}, {pipeline_mode = #tpu.pipeline_mode<synchronous>, transform_indices = @transform_12, window_bounds = array<i64: 1, 256>}, {pipeline_mode = #tpu.pipeline_mode<synchronous>, transform_indices = @transform_13, window_bounds = array<i64: 256, 128>}, {pipeline_mode = #tpu.pipeline_mode<synchronous>, transform_indices = @transform_14, window_bounds = array<i64: 1, 128>}, {transform_indices = @transform_15, window_bounds = array<i64: 128, 128>}]} {
    %c0 = arith.constant 0 : index
    %c0_0 = arith.constant 0 : index
    %0 = vector.load %arg1[%c0, %c0_0] : memref<128x132xf32, #tpu.memory_space<vmem>>, vector<128x132xf32>
    %c0_1 = arith.constant 0 : index
    %c0_2 = arith.constant 0 : index
    %1 = vector.load %arg4[%c0_1, %c0_2] : memref<132x7xbf16, #tpu.memory_space<vmem>>, vector<132x7xbf16>
    %2 = arith.truncf %0 : vector<128x132xf32> to vector<128x132xbf16>
    %cst = arith.constant dense<0.000000e+00> : vector<128x7xf32>
    %3 = tpu.matmul %2, %1, %cst {dimension_numbers = #tpu.dot_dimension_numbers<[1], [0], [0], [1], [0, 0, 1, 1], [], []>} : vector<128x132xbf16>, vector<132x7xbf16>, vector<128x7xf32> -> vector<128x7xf32>
    %c0_3 = arith.constant 0 : index
    %c0_4 = arith.constant 0 : index
    %4 = vector.load %arg2[%c0_3, %c0_4] : memref<128x7xf32, #tpu.memory_space<vmem>>, vector<128x7xf32>
    %c0_5 = arith.constant 0 : index
    %c0_6 = arith.constant 0 : index
    %5 = vector.load %arg5[%c0_5, %c0_6] : memref<7x7xbf16, #tpu.memory_space<vmem>>, vector<7x7xbf16>
    %6 = arith.truncf %4 : vector<128x7xf32> to vector<128x7xbf16>
    %cst_7 = arith.constant dense<0.000000e+00> : vector<128x7xf32>
    %7 = tpu.matmul %6, %5, %cst_7 {dimension_numbers = #tpu.dot_dimension_numbers<[1], [0], [0], [1], [0, 0, 1, 1], [], []>} : vector<128x7xbf16>, vector<7x7xbf16>, vector<128x7xf32> -> vector<128x7xf32>
    %8 = arith.addf %3, %7 : vector<128x7xf32>
    %c0_8 = arith.constant 0 : index
    %c0_9 = arith.constant 0 : index
    %9 = vector.load %arg6[%c0_8, %c0_9] : memref<1x7xf32, #tpu.memory_space<vmem>>, vector<1x7xf32>
    %10 = vector.broadcast %9 : vector<1x7xf32> to vector<128x7xf32>
    %11 = arith.addf %8, %10 : vector<128x7xf32>
    %12 = math.tanh %11 : vector<128x7xf32>
    %c0_10 = arith.constant 0 : index
    %c0_11 = arith.constant 0 : index
    %13 = vector.load %arg7[%c0_10, %c0_11] : memref<7x256xbf16, #tpu.memory_space<vmem>>, vector<7x256xbf16>
    %14 = arith.truncf %12 : vector<128x7xf32> to vector<128x7xbf16>
    %cst_12 = arith.constant dense<0.000000e+00> : vector<128x256xf32>
    %15 = tpu.matmul %14, %13, %cst_12 {dimension_numbers = #tpu.dot_dimension_numbers<[1], [0], [0], [1], [0, 0, 1, 1], [], []>} : vector<128x7xbf16>, vector<7x256xbf16>, vector<128x256xf32> -> vector<128x256xf32>
    %c0_13 = arith.constant 0 : index
    %c0_14 = arith.constant 0 : index
    %16 = vector.load %arg3[%c0_13, %c0_14] : memref<128x32xf32, #tpu.memory_space<vmem>>, vector<128x32xf32>
    %c0_15 = arith.constant 0 : index
    %c0_16 = arith.constant 0 : index
    %17 = vector.load %arg8[%c0_15, %c0_16] : memref<32x256xbf16, #tpu.memory_space<vmem>>, vector<32x256xbf16>
    %18 = arith.truncf %16 : vector<128x32xf32> to vector<128x32xbf16>
    %cst_17 = arith.constant dense<0.000000e+00> : vector<128x256xf32>
    %19 = tpu.matmul %18, %17, %cst_17 {dimension_numbers = #tpu.dot_dimension_numbers<[1], [0], [0], [1], [0, 0, 1, 1], [], []>} : vector<128x32xbf16>, vector<32x256xbf16>, vector<128x256xf32> -> vector<128x256xf32>
    %20 = arith.addf %15, %19 : vector<128x256xf32>
    %c0_18 = arith.constant 0 : index
    %c0_19 = arith.constant 0 : index
    %21 = vector.load %arg9[%c0_18, %c0_19] : memref<1x256xf32, #tpu.memory_space<vmem>>, vector<1x256xf32>
    %22 = vector.broadcast %21 : vector<1x256xf32> to vector<128x256xf32>
    %23 = arith.addf %20, %22 : vector<128x256xf32>
    %cst_20 = arith.constant 0.000000e+00 : f32
    %24 = vector.broadcast %cst_20 : f32 to vector<128x256xf32>
    %25 = arith.cmpf ogt, %23, %24 : vector<128x256xf32>
    %26 = math.exp %23 : vector<128x256xf32>
    %cst_21 = arith.constant 1.000000e+00 : f32
    %27 = vector.broadcast %cst_21 : f32 to vector<128x256xf32>
    %28 = arith.subf %26, %27 : vector<128x256xf32>
    %29 = arith.select %25, %23, %28 : vector<128x256xi1>, vector<128x256xf32>
    %c0_22 = arith.constant 0 : index
    %c0_23 = arith.constant 0 : index
    %30 = vector.load %arg10[%c0_22, %c0_23] : memref<256x256xbf16, #tpu.memory_space<vmem>>, vector<256x256xbf16>
    %31 = arith.truncf %29 : vector<128x256xf32> to vector<128x256xbf16>
    %cst_24 = arith.constant dense<0.000000e+00> : vector<128x256xf32>
    %32 = tpu.matmul %31, %30, %cst_24 {dimension_numbers = #tpu.dot_dimension_numbers<[1], [0], [0], [1], [0, 0, 1, 1], [], []>} : vector<128x256xbf16>, vector<256x256xbf16>, vector<128x256xf32> -> vector<128x256xf32>
    %c0_25 = arith.constant 0 : index
    %c0_26 = arith.constant 0 : index
    %33 = vector.load %arg11[%c0_25, %c0_26] : memref<1x256xf32, #tpu.memory_space<vmem>>, vector<1x256xf32>
    %34 = vector.broadcast %33 : vector<1x256xf32> to vector<128x256xf32>
    %35 = arith.addf %32, %34 : vector<128x256xf32>
    %cst_27 = arith.constant 0.000000e+00 : f32
    %36 = vector.broadcast %cst_27 : f32 to vector<128x256xf32>
    %37 = arith.cmpf ogt, %35, %36 : vector<128x256xf32>
    %38 = math.exp %35 : vector<128x256xf32>
    %cst_28 = arith.constant 1.000000e+00 : f32
    %39 = vector.broadcast %cst_28 : f32 to vector<128x256xf32>
    %40 = arith.subf %38, %39 : vector<128x256xf32>
    %41 = arith.select %37, %35, %40 : vector<128x256xi1>, vector<128x256xf32>
    %c0_29 = arith.constant 0 : index
    %c0_30 = arith.constant 0 : index
    %42 = vector.load %arg12[%c0_29, %c0_30] : memref<256x256xbf16, #tpu.memory_space<vmem>>, vector<256x256xbf16>
    %43 = arith.truncf %41 : vector<128x256xf32> to vector<128x256xbf16>
    %cst_31 = arith.constant dense<0.000000e+00> : vector<128x256xf32>
    %44 = tpu.matmul %43, %42, %cst_31 {dimension_numbers = #tpu.dot_dimension_numbers<[1], [0], [0], [1], [0, 0, 1, 1], [], []>} : vector<128x256xbf16>, vector<256x256xbf16>, vector<128x256xf32> -> vector<128x256xf32>
    %c0_32 = arith.constant 0 : index
    %c0_33 = arith.constant 0 : index
    %45 = vector.load %arg13[%c0_32, %c0_33] : memref<1x256xf32, #tpu.memory_space<vmem>>, vector<1x256xf32>
    %46 = vector.broadcast %45 : vector<1x256xf32> to vector<128x256xf32>
    %47 = arith.addf %44, %46 : vector<128x256xf32>
    %cst_34 = arith.constant 0.000000e+00 : f32
    %48 = vector.broadcast %cst_34 : f32 to vector<128x256xf32>
    %49 = arith.cmpf ogt, %47, %48 : vector<128x256xf32>
    %50 = math.exp %47 : vector<128x256xf32>
    %cst_35 = arith.constant 1.000000e+00 : f32
    %51 = vector.broadcast %cst_35 : f32 to vector<128x256xf32>
    %52 = arith.subf %50, %51 : vector<128x256xf32>
    %53 = arith.select %49, %47, %52 : vector<128x256xi1>, vector<128x256xf32>
    %c0_36 = arith.constant 0 : index
    %c0_37 = arith.constant 0 : index
    %54 = vector.load %arg14[%c0_36, %c0_37] : memref<256x128xbf16, #tpu.memory_space<vmem>>, vector<256x128xbf16>
    %55 = arith.truncf %53 : vector<128x256xf32> to vector<128x256xbf16>
    %cst_38 = arith.constant dense<0.000000e+00> : vector<128x128xf32>
    %56 = tpu.matmul %55, %54, %cst_38 {dimension_numbers = #tpu.dot_dimension_numbers<[1], [0], [0], [1], [0, 0, 1, 1], [], []>} : vector<128x256xbf16>, vector<256x128xbf16>, vector<128x128xf32> -> vector<128x128xf32>
    %c0_39 = arith.constant 0 : index
    %c0_40 = arith.constant 0 : index
    %57 = vector.load %arg15[%c0_39, %c0_40] : memref<1x128xf32, #tpu.memory_space<vmem>>, vector<1x128xf32>
    %58 = vector.broadcast %57 : vector<1x128xf32> to vector<128x128xf32>
    %59 = arith.addf %56, %58 : vector<128x128xf32>
    %c0_41 = arith.constant 0 : index
    %c0_42 = arith.constant 0 : index
    %60 = vector.load %arg16[%c0_41, %c0_42] : memref<128x128xf32, #tpu.memory_space<vmem>>, vector<128x128xf32>
    tpu.vector_store %arg16[%c0_41, %c0_42], %59 {strides = array<i32>} : memref<128x128xf32, #tpu.memory_space<vmem>>, vector<128x128xf32>,
    return
  }
  func.func @transform_0(%arg0: i32) -> (i32, i32) {
    %c0_i32 = arith.constant 0 : i32
    %c0_i32_0 = arith.constant 0 : i32
    return %arg0, %c0_i32 : i32, i32
  }
  func.func @transform_1(%arg0: i32) -> (i32, i32) {
    %c0_i32 = arith.constant 0 : i32
    %c0_i32_0 = arith.constant 0 : i32
    return %arg0, %c0_i32 : i32, i32
  }
  func.func @transform_2(%arg0: i32) -> (i32, i32) {
    %c0_i32 = arith.constant 0 : i32
    %c0_i32_0 = arith.constant 0 : i32
    return %arg0, %c0_i32 : i32, i32
  }
  func.func @transform_3(%arg0: i32) -> (i32, i32) {
    %c0_i32 = arith.constant 0 : i32
    %c0_i32_0 = arith.constant 0 : i32
    %c0_i32_1 = arith.constant 0 : i32
    return %c0_i32, %c0_i32_0 : i32, i32
  }
  func.func @transform_4(%arg0: i32) -> (i32, i32) {
    %c0_i32 = arith.constant 0 : i32
    %c0_i32_0 = arith.constant 0 : i32
    %c0_i32_1 = arith.constant 0 : i32
    return %c0_i32, %c0_i32_0 : i32, i32
  }
  func.func @transform_5(%arg0: i32) -> (i32, i32) {
    %c0_i32 = arith.constant 0 : i32
    %c0_i32_0 = arith.constant 0 : i32
    %c0_i32_1 = arith.constant 0 : i32
    return %c0_i32, %c0_i32_0 : i32, i32
  }
  func.func @transform_6(%arg0: i32) -> (i32, i32) {
    %c0_i32 = arith.constant 0 : i32
    %c0_i32_0 = arith.constant 0 : i32
    %c0_i32_1 = arith.constant 0 : i32
    return %c0_i32, %c0_i32_0 : i32, i32
  }
  func.func @transform_7(%arg0: i32) -> (i32, i32) {
    %c0_i32 = arith.constant 0 : i32
    %c0_i32_0 = arith.constant 0 : i32
    %c0_i32_1 = arith.constant 0 : i32
    return %c0_i32, %c0_i32_0 : i32, i32
  }
  func.func @transform_8(%arg0: i32) -> (i32, i32) {
    %c0_i32 = arith.constant 0 : i32
    %c0_i32_0 = arith.constant 0 : i32
    %c0_i32_1 = arith.constant 0 : i32
    return %c0_i32, %c0_i32_0 : i32, i32
  }
  func.func @transform_9(%arg0: i32) -> (i32, i32) {
    %c0_i32 = arith.constant 0 : i32
    %c0_i32_0 = arith.constant 0 : i32
    %c0_i32_1 = arith.constant 0 : i32
    return %c0_i32, %c0_i32_0 : i32, i32
  }
  func.func @transform_10(%arg0: i32) -> (i32, i32) {
    %c0_i32 = arith.constant 0 : i32
    %c0_i32_0 = arith.constant 0 : i32
    %c0_i32_1 = arith.constant 0 : i32
    return %c0_i32, %c0_i32_0 : i32, i32
  }
  func.func @transform_11(%arg0: i32) -> (i32, i32) {
    %c0_i32 = arith.constant 0 : i32
    %c0_i32_0 = arith.constant 0 : i32
    %c0_i32_1 = arith.constant 0 : i32
    return %c0_i32, %c0_i32_0 : i32, i32
  }
  func.func @transform_12(%arg0: i32) -> (i32, i32) {
    %c0_i32 = arith.constant 0 : i32
    %c0_i32_0 = arith.constant 0 : i32
    %c0_i32_1 = arith.constant 0 : i32
    return %c0_i32, %c0_i32_0 : i32, i32
  }
  func.func @transform_13(%arg0: i32) -> (i32, i32) {
    %c0_i32 = arith.constant 0 : i32
    %c0_i32_0 = arith.constant 0 : i32
    %c0_i32_1 = arith.constant 0 : i32
    return %c0_i32, %c0_i32_0 : i32, i32
  }
  func.func @transform_14(%arg0: i32) -> (i32, i32) {
    %c0_i32 = arith.constant 0 : i32
    %c0_i32_0 = arith.constant 0 : i32
    %c0_i32_1 = arith.constant 0 : i32
    return %c0_i32, %c0_i32_0 : i32, i32
  }
  func.func @transform_15(%arg0: i32) -> (i32, i32) {
    %c0_i32 = arith.constant 0 : i32
    %c0_i32_0 = arith.constant 0 : i32
    return %arg0, %c0_i32 : i32, i32
  }
}

</mosaic_0001>

<llo_original>
// kernel: tpu_custom_call.1
$region0: #{tpu_custom_call.1}
  #allocation0 [shape = 'u32[]', space=smem, size = 0x4, offset = 0x4, fixed_abs, tag = 'smem constant byte address 0x4 - core index']
  #allocation1 [shape = 'u32[144,128]{1,0:T(1,128)}', space=vmem, size = 0x12000, scoped, tag = 'internal scratch']
  %s0 = inlined_call_operand.vmem [shape: f32[2,132], index: 0, kind: input, shape index: {}]
  %s1 = inlined_call_operand.vmem [shape: f32[2,7], index: 1, kind: input, shape index: {}]
  %s2 = inlined_call_operand.vmem [shape: f32[2,32], index: 2, kind: input, shape index: {}]
  %s3 = inlined_call_operand.vmem [shape: bf16[132,7], index: 3, kind: input, shape index: {}]
  %s4 = inlined_call_operand.vmem [shape: bf16[7,7], index: 4, kind: input, shape index: {}]
  %s5 = inlined_call_operand.vmem [shape: f32[1,7], index: 5, kind: input, shape index: {}]
  %s6 = inlined_call_operand.vmem [shape: bf16[7,256], index: 6, kind: input, shape index: {}]
  %s7 = inlined_call_operand.vmem [shape: bf16[32,256], index: 7, kind: input, shape index: {}]
  %s8 = inlined_call_operand.vmem [shape: f32[1,256], index: 8, kind: input, shape index: {}]
  %s9 = inlined_call_operand.hbm [shape: bf16[256,256], index: 9, kind: input, shape index: {}]
  %s10 = inlined_call_operand.vmem [shape: f32[1,256], index: 10, kind: input, shape index: {}]
  %s11 = inlined_call_operand.hbm [shape: bf16[256,256], index: 11, kind: input, shape index: {}]
  %s12 = inlined_call_operand.vmem [shape: f32[1,256], index: 12, kind: input, shape index: {}]
  %s13 = inlined_call_operand.hbm [shape: bf16[256,128], index: 13, kind: input, shape index: {}]
  %s14 = inlined_call_operand.vmem [shape: f32[1,128], index: 14, kind: input, shape index: {}]
  %s15 = inlined_call_operand.hbm [shape: f32[2,128], index: 15, kind: output, shape index: {}]
  %s16 = sld [smem:[#allocation0]]
  $region82: #{tpu_custom_call.1} parent=0
    _
  %s18 = ssub.s32 1, %s16
  %s19 = scalar_select 0, %s18, %s16
  $region1: #{tpu_custom_call.1} parent=0
    #allocation2 [shape = 'u8[131072]{0}', space=vmem, size = 0x20000, scoped, tag = 'input window, operand 9, single buffered']
    #allocation3 [shape = 's32[1]{0}', space=sflag, size = 0x4, scoped, tag = 'scoped memory for tpu_custom_call.1']
    #allocation4 [shape = 's32[1]{0}', space=sflag, size = 0x4, scoped, tag = 'scoped memory for tpu_custom_call.1']
    #allocation5 [shape = 'u8[131072]{0}', space=vmem, size = 0x20000, scoped, tag = 'input window, operand 11, single buffered']
    #allocation6 [shape = 's32[1]{0}', space=sflag, size = 0x4, scoped, tag = 'scoped memory for tpu_custom_call.1']
    #allocation7 [shape = 'u8[65536]{0}', space=vmem, size = 0x10000, scoped, tag = 'input window, operand 13, single buffered']
    #allocation8 [shape = 'u8[65536]{0}', space=vmem, size = 0x10000, scoped, tag = 'output window, operand 0, single buffered']
    %20 = vsyncpa [#allocation3], 0
    %21 = vsyncpa [#allocation6], 0
    %22 = vsyncpa [#allocation4], 0
    // Predicated region
    $region2: #{tpu_custom_call.1} parent=1 // pred_check
      _
    $region3: #{tpu_custom_call.1} parent=1 // pred_check_branch
      %24 = sbr.rel (0) target = $region5
    $region4: #{tpu_custom_call.1} parent=1 // pred_region
      _
    $region5: #{tpu_custom_call.1} parent=1 // pred_fallthru
      _
    // Predicated region
    $region6: #{tpu_custom_call.1} parent=1 // pred_check
      _
    $region7: #{tpu_custom_call.1} parent=1 // pred_check_branch
      %26 = sbr.rel (0) target = $region9
    $region8: #{tpu_custom_call.1} parent=1 // pred_region
      _
    $region9: #{tpu_custom_call.1} parent=1 // pred_fallthru
      _
    // Predicated region
    $region10: #{tpu_custom_call.1} parent=1 // pred_check
      _
    $region11: #{tpu_custom_call.1} parent=1 // pred_check_branch
      %28 = sbr.rel (0) target = $region13
    $region12: #{tpu_custom_call.1} parent=1 // pred_region
      _
    $region13: #{tpu_custom_call.1} parent=1 // pred_fallthru
      _
    // Predicated region
    $region14: #{tpu_custom_call.1} parent=1 // pred_check
      _
    $region15: #{tpu_custom_call.1} parent=1 // pred_check_branch
      %30 = sbr.rel (0) target = $region17
    $region16: #{tpu_custom_call.1} parent=1 // pred_region
      _
    $region17: #{tpu_custom_call.1} parent=1 // pred_fallthru
      _
    // Predicated region
    $region18: #{tpu_custom_call.1} parent=1 // pred_check
      _
    $region19: #{tpu_custom_call.1} parent=1 // pred_check_branch
      %32 = sbr.rel (0) target = $region21
    $region20: #{tpu_custom_call.1} parent=1 // pred_region
      _
    $region21: #{tpu_custom_call.1} parent=1 // pred_fallthru
      _
    // Predicated region
    $region22: #{tpu_custom_call.1} parent=1 // pred_check
      _
    $region23: #{tpu_custom_call.1} parent=1 // pred_check_branch
      %34 = sbr.rel (0) target = $region25
    $region24: #{tpu_custom_call.1} parent=1 // pred_region
      _
    $region25: #{tpu_custom_call.1} parent=1 // pred_fallthru
      _
    // Predicated region
    $region26: #{tpu_custom_call.1} parent=1 // pred_check
      _
    $region27: #{tpu_custom_call.1} parent=1 // pred_check_branch
      %36 = sbr.rel (0) target = $region29
    $region28: #{tpu_custom_call.1} parent=1 // pred_region
      _
    $region29: #{tpu_custom_call.1} parent=1 // pred_fallthru
      _
    // Predicated region
    $region30: #{tpu_custom_call.1} parent=1 // pred_check
      _
    $region31: #{tpu_custom_call.1} parent=1 // pred_check_branch
      %38 = sbr.rel (0) target = $region33
    $region32: #{tpu_custom_call.1} parent=1 // pred_region
      _
    $region33: #{tpu_custom_call.1} parent=1 // pred_fallthru
      _
    // Predicated region
    $region34: #{tpu_custom_call.1} parent=1 // pred_check
      _
    $region35: #{tpu_custom_call.1} parent=1 // pred_check_branch
      %40 = sbr.rel (0) target = $region37
    $region36: #{tpu_custom_call.1} parent=1 // pred_region
      _
    $region37: #{tpu_custom_call.1} parent=1 // pred_fallthru
      _
    // Predicated region
    $region38: #{tpu_custom_call.1} parent=1 // pred_check
      _
    $region39: #{tpu_custom_call.1} parent=1 // pred_check_branch
      %42 = sbr.rel (0) target = $region41
    $region40: #{tpu_custom_call.1} parent=1 // pred_region
      %s44 = ssub.s32 4096, 4096
      %45 = vsyncadd [#allocation3], %s44
      %s46 = sshll.u32 [#allocation2], 4
      %s47 = int_to_ptr.vmem [resolvable:$true] %s46
      %52 = dma.hbm_to_vmem [thread:$0]  %s9, 4096, %s47, [#allocation3], 128, 128, 8
    $region41: #{tpu_custom_call.1} parent=1 // pred_fallthru
      _
    // Predicated region
    $region42: #{tpu_custom_call.1} parent=1 // pred_check
      _
    $region43: #{tpu_custom_call.1} parent=1 // pred_check_branch
      %54 = sbr.rel (0) target = $region45
    $region44: #{tpu_custom_call.1} parent=1 // pred_region
      _
    $region45: #{tpu_custom_call.1} parent=1 // pred_fallthru
      _
    // Predicated region
    $region46: #{tpu_custom_call.1} parent=1 // pred_check
      _
    $region47: #{tpu_custom_call.1} parent=1 // pred_check_branch
      %56 = sbr.rel (0) target = $region49
    $region48: #{tpu_custom_call.1} parent=1 // pred_region
      %s58 = ssub.s32 4096, 4096
      %59 = vsyncadd [#allocation6], %s58
      %s60 = sshll.u32 [#allocation5], 4
      %s61 = int_to_ptr.vmem [resolvable:$true] %s60
      %66 = dma.hbm_to_vmem [thread:$0]  %s11, 4096, %s61, [#allocation6], 128, 128, 8
    $region49: #{tpu_custom_call.1} parent=1 // pred_fallthru
      _
    // Predicated region
    $region50: #{tpu_custom_call.1} parent=1 // pred_check
      _
    $region51: #{tpu_custom_call.1} parent=1 // pred_check_branch
      %68 = sbr.rel (0) target = $region53
    $region52: #{tpu_custom_call.1} parent=1 // pred_region
      _
    $region53: #{tpu_custom_call.1} parent=1 // pred_fallthru
      _
    // Predicated region
    $region54: #{tpu_custom_call.1} parent=1 // pred_check
      _
    $region55: #{tpu_custom_call.1} parent=1 // pred_check_branch
      %70 = sbr.rel (0) target = $region57
    $region56: #{tpu_custom_call.1} parent=1 // pred_region
      %s72 = ssub.s32 2048, 2048
      %73 = vsyncadd [#allocation6], %s72
      %s74 = sshll.u32 [#allocation7], 4
      %s75 = int_to_ptr.vmem [resolvable:$true] %s74
      %80 = dma.hbm_to_vmem [thread:$0]  %s13, 2048, %s75, [#allocation6], 64, 64, 4
    $region57: #{tpu_custom_call.1} parent=1 // pred_fallthru
      _
    // Predicated region
    $region58: #{tpu_custom_call.1} parent=1 // pred_check
      _
    $region59: #{tpu_custom_call.1} parent=1 // pred_check_branch
      %82 = sbr.rel (0) target = $region61
    $region60: #{tpu_custom_call.1} parent=1 // pred_region
      _
    $region61: #{tpu_custom_call.1} parent=1 // pred_fallthru
      _
    // Predicated region
    $region62: #{tpu_custom_call.1} parent=1 // pred_check
      _
    $region63: #{tpu_custom_call.1} parent=1 // pred_check_branch
      %84 = sbr.rel (0) target = $region65
    $region64: #{tpu_custom_call.1} parent=1 // pred_region
      %85 = dma.done [#allocation3], 4096
    $region65: #{tpu_custom_call.1} parent=1 // pred_fallthru
      _
    // Predicated region
    $region66: #{tpu_custom_call.1} parent=1 // pred_check
      _
    $region67: #{tpu_custom_call.1} parent=1 // pred_check_branch
      %87 = sbr.rel (0) target = $region69
    $region68: #{tpu_custom_call.1} parent=1 // pred_region
      %88 = dma.done [#allocation6], 4096
    $region69: #{tpu_custom_call.1} parent=1 // pred_fallthru
      _
    // Predicated region
    $region70: #{tpu_custom_call.1} parent=1 // pred_check
      _
    $region71: #{tpu_custom_call.1} parent=1 // pred_check_branch
      %90 = sbr.rel (0) target = $region73
    $region72: #{tpu_custom_call.1} parent=1 // pred_region
      %91 = dma.done [#allocation6], 2048
    $region73: #{tpu_custom_call.1} parent=1 // pred_fallthru
      _
    %v93 = vld [vmem:[%s0] sm:$0xf]
    %v94 = vld [vmem:[%s0 + $0x4] sm:$0xf]
    %v95 = vld [vmem:[%s0 + $0x8] sm:$0xf]
    %v96 = vld [vmem:[%s0 + $0xc] sm:$0xf]
    %v97 = vld [vmem:[%s0 + $0x10] sm:$0xf]
    %v98 = vld [vmem:[%s0 + $0x14] sm:$0xf]
    %v99 = vld [vmem:[%s0 + $0x18] sm:$0xf]
    %v100 = vld [vmem:[%s0 + $0x1c] sm:$0xf]
    %v101 = vld [vmem:[%s0 + $0x20] sm:$0xf]
    %v102 = vld [vmem:[%s0 + $0x24] sm:$0xf]
    %v103 = vld [vmem:[%s0 + $0x28] sm:$0xf]
    %v104 = vld [vmem:[%s0 + $0x2c] sm:$0xf]
    %v105 = vld [vmem:[%s0 + $0x30] sm:$0xf]
    %v106 = vld [vmem:[%s0 + $0x34] sm:$0xf]
    %v107 = vld [vmem:[%s0 + $0x38] sm:$0xf]
    %v108 = vld [vmem:[%s0 + $0x3c] sm:$0xf]
    %v109 = vld [vmem:[%s0 + $0x40] sm:$0xf]
    %v110 = vld [vmem:[%s0 + $0x44] sm:$0xf]
    %v111 = vld [vmem:[%s0 + $0x48] sm:$0xf]
    %v112 = vld [vmem:[%s0 + $0x4c] sm:$0xf]
    %v113 = vld [vmem:[%s0 + $0x50] sm:$0xf]
    %v114 = vld [vmem:[%s0 + $0x54] sm:$0xf]
    %v115 = vld [vmem:[%s0 + $0x58] sm:$0xf]
    %v116 = vld [vmem:[%s0 + $0x5c] sm:$0xf]
    %v117 = vld [vmem:[%s0 + $0x60] sm:$0xf]
    %v118 = vld [vmem:[%s0 + $0x64] sm:$0xf]
    %v119 = vld [vmem:[%s0 + $0x68] sm:$0xf]
    %v120 = vld [vmem:[%s0 + $0x6c] sm:$0xf]
    %v121 = vld [vmem:[%s0 + $0x70] sm:$0xf]
    %v122 = vld [vmem:[%s0 + $0x74] sm:$0xf]
    %v123 = vld [vmem:[%s0 + $0x78] sm:$0xf]
    %v124 = vld [vmem:[%s0 + $0x7c] sm:$0xf]
    %v125 = vld [vmem:[%s0 + $0x80] sm:$0xf]
    %v126 = vld [vmem:[%s0 + $0x84] sm:$0xf]
    %v127 = vld [vmem:[%s0 + $0x88] sm:$0xf]
    %v128 = vld [vmem:[%s0 + $0x8c] sm:$0xf]
    %v129 = vld [vmem:[%s0 + $0x90] sm:$0xf]
    %v130 = vld [vmem:[%s0 + $0x94] sm:$0xf]
    %v131 = vld [vmem:[%s0 + $0x98] sm:$0xf]
    %v132 = vld [vmem:[%s0 + $0x9c] sm:$0xf]
    %v133 = vld [vmem:[%s0 + $0xa0] sm:$0xf]
    %v134 = vld [vmem:[%s0 + $0xa4] sm:$0xf]
    %v135 = vld [vmem:[%s0 + $0xa8] sm:$0xf]
    %v136 = vld [vmem:[%s0 + $0xac] sm:$0xf]
    %v137 = vld [vmem:[%s0 + $0xb0] sm:$0xf]
    %v138 = vld [vmem:[%s0 + $0xb4] sm:$0xf]
    %v139 = vld [vmem:[%s0 + $0xb8] sm:$0xf]
    %v140 = vld [vmem:[%s0 + $0xbc] sm:$0xf]
    %v141 = vld [vmem:[%s0 + $0xc0] sm:$0xf]
    %v142 = vld [vmem:[%s0 + $0xc4] sm:$0xf]
    %v143 = vld [vmem:[%s0 + $0xc8] sm:$0xf]
    %v144 = vld [vmem:[%s0 + $0xcc] sm:$0xf]
    %v145 = vld [vmem:[%s0 + $0xd0] sm:$0xf]
    %v146 = vld [vmem:[%s0 + $0xd4] sm:$0xf]
    %v147 = vld [vmem:[%s0 + $0xd8] sm:$0xf]
    %v148 = vld [vmem:[%s0 + $0xdc] sm:$0xf]
    %v149 = vld [vmem:[%s0 + $0xe0] sm:$0xf]
    %v150 = vld [vmem:[%s0 + $0xe4] sm:$0xf]
    %v151 = vld [vmem:[%s0 + $0xe8] sm:$0xf]
    %v152 = vld [vmem:[%s0 + $0xec] sm:$0xf]
    %v153 = vld [vmem:[%s0 + $0xf0] sm:$0xf]
    %v154 = vld [vmem:[%s0 + $0xf4] sm:$0xf]
    %v155 = vld [vmem:[%s0 + $0xf8] sm:$0xf]
    %v156 = vld [vmem:[%s0 + $0xfc] sm:$0xf]
    %v157 = vld [vmem:[%s3] sm:$0xf]
    %v158 = vld [vmem:[%s3 + $0x4] sm:$0xf]
    %v159 = vld [vmem:[%s3 + $0x8] sm:$0xf]
    %v160 = vld [vmem:[%s3 + $0xc] sm:$0xf]
    %v161 = vld [vmem:[%s3 + $0x10] sm:$0xf]
    %v162 = vld [vmem:[%s3 + $0x14] sm:$0xf]
    %v163 = vld [vmem:[%s3 + $0x18] sm:$0xf]
    %v164 = vld [vmem:[%s3 + $0x1c] sm:$0xf]
    %v165 = vld [vmem:[%s3 + $0x20] sm:$0xf]
    %v166 = vld [vmem:[%s3 + $0x24] sm:$0xf]
    %v167 = vld [vmem:[%s3 + $0x28] sm:$0xf]
    %v168 = vld [vmem:[%s3 + $0x2c] sm:$0xf]
    %v169 = vld [vmem:[%s3 + $0x30] sm:$0xf]
    %v170 = vld [vmem:[%s3 + $0x34] sm:$0xf]
    %v171 = vld [vmem:[%s3 + $0x38] sm:$0xf]
    %v172 = vld [vmem:[%s3 + $0x3c] sm:$0xf]
    %v173 = vld [vmem:[%s3 + $0x40] sm:$0x3]
    %v238 = vcombine.low %v93, %v94
    %v239 = vcombine.low %v95, %v96
    %v241 = vunpack.c.l.s4 1983009808
    %v242 = vunpack.c.0.s8 %v241
    %v243 = vlaneseq
    %v244 = vshrl.u32 %v243, 7
    %v245 = vsub.s32 %v242, %v244
    %v246 = vrot.slane %v238, %v245
    %v248 = vunpack.c.l.s4 1983009808
    %v249 = vunpack.c.0.s8 %v248
    %v250 = vlaneseq
    %v251 = vshrl.u32 %v250, 7
    %v252 = vsub.s32 %v249, %v251
    %v253 = vrot.slane %v239, %v252
    %v254 = vcombine.low %v246, %v253
    %v255 = vcombine.high %v246, %v253
    %v256 = vcombine.low %v97, %v98
    %v257 = vcombine.low %v99, %v100
    %v259 = vunpack.c.l.s4 1983009808
    %v260 = vunpack.c.0.s8 %v259
    %v261 = vlaneseq
    %v262 = vshrl.u32 %v261, 7
    %v263 = vsub.s32 %v260, %v262
    %v264 = vrot.slane %v256, %v263
    %v266 = vunpack.c.l.s4 1983009808
    %v267 = vunpack.c.0.s8 %v266
    %v268 = vlaneseq
    %v269 = vshrl.u32 %v268, 7
    %v270 = vsub.s32 %v267, %v269
    %v271 = vrot.slane %v257, %v270
    %v272 = vcombine.low %v264, %v271
    %v273 = vcombine.high %v264, %v271
    %v274 = vcombine.low %v101, %v102
    %v275 = vcombine.low %v103, %v104
    %v277 = vunpack.c.l.s4 1983009808
    %v278 = vunpack.c.0.s8 %v277
    %v279 = vlaneseq
    %v280 = vshrl.u32 %v279, 7
    %v281 = vsub.s32 %v278, %v280
    %v282 = vrot.slane %v274, %v281
    %v284 = vunpack.c.l.s4 1983009808
    %v285 = vunpack.c.0.s8 %v284
    %v286 = vlaneseq
    %v287 = vshrl.u32 %v286, 7
    %v288 = vsub.s32 %v285, %v287
    %v289 = vrot.slane %v275, %v288
    %v290 = vcombine.low %v282, %v289
    %v291 = vcombine.high %v282, %v289
    %v292 = vcombine.low %v105, %v106
    %v293 = vcombine.low %v107, %v108
    %v295 = vunpack.c.l.s4 1983009808
    %v296 = vunpack.c.0.s8 %v295
    %v297 = vlaneseq
    %v298 = vshrl.u32 %v297, 7
    %v299 = vsub.s32 %v296, %v298
    %v300 = vrot.slane %v292, %v299
    %v302 = vunpack.c.l.s4 1983009808
    %v303 = vunpack.c.0.s8 %v302
    %v304 = vlaneseq
    %v305 = vshrl.u32 %v304, 7
    %v306 = vsub.s32 %v303, %v305
    %v307 = vrot.slane %v293, %v306
    %v308 = vcombine.low %v300, %v307
    %v309 = vcombine.high %v300, %v307
    %v310 = vcombine.low %v109, %v110
    %v311 = vcombine.low %v111, %v112
    %v313 = vunpack.c.l.s4 1983009808
    %v314 = vunpack.c.0.s8 %v313
    %v315 = vlaneseq
    %v316 = vshrl.u32 %v315, 7
    %v317 = vsub.s32 %v314, %v316
    %v318 = vrot.slane %v310, %v317
    %v320 = vunpack.c.l.s4 1983009808
    %v321 = vunpack.c.0.s8 %v320
    %v322 = vlaneseq
    %v323 = vshrl.u32 %v322, 7
    %v324 = vsub.s32 %v321, %v323
    %v325 = vrot.slane %v311, %v324
    %v326 = vcombine.low %v318, %v325
    %v327 = vcombine.high %v318, %v325
    %v328 = vcombine.low %v113, %v114
    %v329 = vcombine.low %v115, %v116
    %v331 = vunpack.c.l.s4 1983009808
    %v332 = vunpack.c.0.s8 %v331
    %v333 = vlaneseq
    %v334 = vshrl.u32 %v333, 7
    %v335 = vsub.s32 %v332, %v334
    %v336 = vrot.slane %v328, %v335
    %v338 = vunpack.c.l.s4 1983009808
    %v339 = vunpack.c.0.s8 %v338
    %v340 = vlaneseq
    %v341 = vshrl.u32 %v340, 7
    %v342 = vsub.s32 %v339, %v341
    %v343 = vrot.slane %v329, %v342
    %v344 = vcombine.low %v336, %v343
    %v345 = vcombine.high %v336, %v343
    %v346 = vcombine.low %v117, %v118
    %v347 = vcombine.low %v119, %v120
    %v349 = vunpack.c.l.s4 1983009808
    %v350 = vunpack.c.0.s8 %v349
    %v351 = vlaneseq
    %v352 = vshrl.u32 %v351, 7
    %v353 = vsub.s32 %v350, %v352
    %v354 = vrot.slane %v346, %v353
    %v356 = vunpack.c.l.s4 1983009808
    %v357 = vunpack.c.0.s8 %v356
    %v358 = vlaneseq
    %v359 = vshrl.u32 %v358, 7
    %v360 = vsub.s32 %v357, %v359
    %v361 = vrot.slane %v347, %v360
    %v362 = vcombine.low %v354, %v361
    %v363 = vcombine.high %v354, %v361
    %v364 = vcombine.low %v121, %v122
    %v365 = vcombine.low %v123, %v124
    %v367 = vunpack.c.l.s4 1983009808
    %v368 = vunpack.c.0.s8 %v367
    %v369 = vlaneseq
    %v370 = vshrl.u32 %v369, 7
    %v371 = vsub.s32 %v368, %v370
    %v372 = vrot.slane %v364, %v371
    %v374 = vunpack.c.l.s4 1983009808
    %v375 = vunpack.c.0.s8 %v374
    %v376 = vlaneseq
    %v377 = vshrl.u32 %v376, 7
    %v378 = vsub.s32 %v375, %v377
    %v379 = vrot.slane %v365, %v378
    %v380 = vcombine.low %v372, %v379
    %v381 = vcombine.high %v372, %v379
    %v382 = vcombine.low %v125, %v126
    %v383 = vcombine.low %v127, %v128
    %v385 = vunpack.c.l.s4 1983009808
    %v386 = vunpack.c.0.s8 %v385
    %v387 = vlaneseq
    %v388 = vshrl.u32 %v387, 7
    %v389 = vsub.s32 %v386, %v388
    %v390 = vrot.slane %v382, %v389
    %v392 = vunpack.c.l.s4 1983009808
    %v393 = vunpack.c.0.s8 %v392
    %v394 = vlaneseq
    %v395 = vshrl.u32 %v394, 7
    %v396 = vsub.s32 %v393, %v395
    %v397 = vrot.slane %v383, %v396
    %v398 = vcombine.low %v390, %v397
    %v399 = vcombine.high %v390, %v397
    %v400 = vcombine.low %v129, %v130
    %v401 = vcombine.low %v131, %v132
    %v403 = vunpack.c.l.s4 1983009808
    %v404 = vunpack.c.0.s8 %v403
    %v405 = vlaneseq
    %v406 = vshrl.u32 %v405, 7
    %v407 = vsub.s32 %v404, %v406
    %v408 = vrot.slane %v400, %v407
    %v410 = vunpack.c.l.s4 1983009808
    %v411 = vunpack.c.0.s8 %v410
    %v412 = vlaneseq
    %v413 = vshrl.u32 %v412, 7
    %v414 = vsub.s32 %v411, %v413
    %v415 = vrot.slane %v401, %v414
    %v416 = vcombine.low %v408, %v415
    %v417 = vcombine.high %v408, %v415
    %v418 = vcombine.low %v133, %v134
    %v419 = vcombine.low %v135, %v136
    %v421 = vunpack.c.l.s4 1983009808
    %v422 = vunpack.c.0.s8 %v421
    %v423 = vlaneseq
    %v424 = vshrl.u32 %v423, 7
    %v425 = vsub.s32 %v422, %v424
    %v426 = vrot.slane %v418, %v425
    %v428 = vunpack.c.l.s4 1983009808
    %v429 = vunpack.c.0.s8 %v428
    %v430 = vlaneseq
    %v431 = vshrl.u32 %v430, 7
    %v432 = vsub.s32 %v429, %v431
    %v433 = vrot.slane %v419, %v432
    %v434 = vcombine.low %v426, %v433
    %v435 = vcombine.high %v426, %v433
    %v436 = vcombine.low %v137, %v138
    %v437 = vcombine.low %v139, %v140
    %v439 = vunpack.c.l.s4 1983009808
    %v440 = vunpack.c.0.s8 %v439
    %v441 = vlaneseq
    %v442 = vshrl.u32 %v441, 7
    %v443 = vsub.s32 %v440, %v442
    %v444 = vrot.slane %v436, %v443
    %v446 = vunpack.c.l.s4 1983009808
    %v447 = vunpack.c.0.s8 %v446
    %v448 = vlaneseq
    %v449 = vshrl.u32 %v448, 7
    %v450 = vsub.s32 %v447, %v449
    %v451 = vrot.slane %v437, %v450
    %v452 = vcombine.low %v444, %v451
    %v453 = vcombine.high %v444, %v451
    %v454 = vcombine.low %v141, %v142
    %v455 = vcombine.low %v143, %v144
    %v457 = vunpack.c.l.s4 1983009808
    %v458 = vunpack.c.0.s8 %v457
    %v459 = vlaneseq
    %v460 = vshrl.u32 %v459, 7
    %v461 = vsub.s32 %v458, %v460
    %v462 = vrot.slane %v454, %v461
    %v464 = vunpack.c.l.s4 1983009808
    %v465 = vunpack.c.0.s8 %v464
    %v466 = vlaneseq
    %v467 = vshrl.u32 %v466, 7
    %v468 = vsub.s32 %v465, %v467
    %v469 = vrot.slane %v455, %v468
    %v470 = vcombine.low %v462, %v469
    %v471 = vcombine.high %v462, %v469
    %v472 = vcombine.low %v145, %v146
    %v473 = vcombine.low %v147, %v148
    %v475 = vunpack.c.l.s4 1983009808
    %v476 = vunpack.c.0.s8 %v475
    %v477 = vlaneseq
    %v478 = vshrl.u32 %v477, 7
    %v479 = vsub.s32 %v476, %v478
    %v480 = vrot.slane %v472, %v479
    %v482 = vunpack.c.l.s4 1983009808
    %v483 = vunpack.c.0.s8 %v482
    %v484 = vlaneseq
    %v485 = vshrl.u32 %v484, 7
    %v486 = vsub.s32 %v483, %v485
    %v487 = vrot.slane %v473, %v486
    %v488 = vcombine.low %v480, %v487
    %v489 = vcombine.high %v480, %v487
    %v490 = vcombine.low %v149, %v150
    %v491 = vcombine.low %v151, %v152
    %v493 = vunpack.c.l.s4 1983009808
    %v494 = vunpack.c.0.s8 %v493
    %v495 = vlaneseq
    %v496 = vshrl.u32 %v495, 7
    %v497 = vsub.s32 %v494, %v496
    %v498 = vrot.slane %v490, %v497
    %v500 = vunpack.c.l.s4 1983009808
    %v501 = vunpack.c.0.s8 %v500
    %v502 = vlaneseq
    %v503 = vshrl.u32 %v502, 7
    %v504 = vsub.s32 %v501, %v503
    %v505 = vrot.slane %v491, %v504
    %v506 = vcombine.low %v498, %v505
    %v507 = vcombine.high %v498, %v505
    %v508 = vcombine.low %v153, %v154
    %v509 = vcombine.low %v155, %v156
    %v511 = vunpack.c.l.s4 1983009808
    %v512 = vunpack.c.0.s8 %v511
    %v513 = vlaneseq
    %v514 = vshrl.u32 %v513, 7
    %v515 = vsub.s32 %v512, %v514
    %v516 = vrot.slane %v508, %v515
    %v518 = vunpack.c.l.s4 1983009808
    %v519 = vunpack.c.0.s8 %v518
    %v520 = vlaneseq
    %v521 = vshrl.u32 %v520, 7
    %v522 = vsub.s32 %v519, %v521
    %v523 = vrot.slane %v509, %v522
    %v524 = vcombine.low %v516, %v523
    %v525 = vcombine.high %v516, %v523
    %v558 = vpack.c.bf16 %v272, %v254
    %v559 = vpack.c.bf16 %v273, %v255
    %v560 = vpack.c.bf16 %v308, %v290
    %v561 = vpack.c.bf16 %v309, %v291
    %v562 = vpack.c.bf16 %v344, %v326
    %v563 = vpack.c.bf16 %v345, %v327
    %v564 = vpack.c.bf16 %v380, %v362
    %v565 = vpack.c.bf16 %v381, %v363
    %v566 = vpack.c.bf16 %v416, %v398
    %v567 = vpack.c.bf16 %v417, %v399
    %v568 = vpack.c.bf16 %v452, %v434
    %v569 = vpack.c.bf16 %v453, %v435
    %v570 = vpack.c.bf16 %v488, %v470
    %v571 = vpack.c.bf16 %v489, %v471
    %v572 = vpack.c.bf16 %v524, %v506
    %v573 = vpack.c.bf16 %v525, %v507
    %v574 = vld [vmem:[%s1] sm:$0xff]
    %v575 = vld [vmem:[%s1 + $0x8] sm:$0xff]
    %v576 = vld [vmem:[%s1 + $0x10] sm:$0xff]
    %v577 = vld [vmem:[%s1 + $0x18] sm:$0xff]
    %v578 = vld [vmem:[%s1 + $0x20] sm:$0xff]
    %v579 = vld [vmem:[%s1 + $0x28] sm:$0xff]
    %v580 = vld [vmem:[%s1 + $0x30] sm:$0xff]
    %v581 = vld [vmem:[%s1 + $0x38] sm:$0xff]
    %v582 = vld [vmem:[%s1 + $0x40] sm:$0xff]
    %v583 = vld [vmem:[%s1 + $0x48] sm:$0xff]
    %v584 = vld [vmem:[%s1 + $0x50] sm:$0xff]
    %v585 = vld [vmem:[%s1 + $0x58] sm:$0xff]
    %v586 = vld [vmem:[%s1 + $0x60] sm:$0xff]
    %v587 = vld [vmem:[%s1 + $0x68] sm:$0xff]
    %v588 = vld [vmem:[%s1 + $0x70] sm:$0xff]
    %v589 = vld [vmem:[%s1 + $0x78] sm:$0xff]
    %v590 = vld [vmem:[%s4] sm:$0xf]
    %v591 = vpack.c.bf16 %v575, %v574
    %v592 = vpack.c.bf16 %v577, %v576
    %v593 = vpack.c.bf16 %v579, %v578
    %v594 = vpack.c.bf16 %v581, %v580
    %v595 = vpack.c.bf16 %v583, %v582
    %v596 = vpack.c.bf16 %v585, %v584
    %v597 = vpack.c.bf16 %v587, %v586
    %v598 = vpack.c.bf16 %v589, %v588
    %vm599 = vcmask 56320
    %v601 = vsel %vm599, %v591, 0
    %v604 = vsel %vm599, %v592, 0
    %v607 = vsel %vm599, %v593, 0
    %v610 = vsel %vm599, %v594, 0
    %v613 = vsel %vm599, %v595, 0
    %v616 = vsel %vm599, %v596, 0
    %v619 = vsel %vm599, %v597, 0
    %v622 = vsel %vm599, %v598, 0
    %vm624 = vcmask 1042432
    %vm625 = vcmask 1043456
    %v626 = vsel %vm624, 4294967295, 65535
    %v627 = vsel %vm625, %v626, 0
    %v629 = vand.u32 %v590, %v627
    %631 = vmatprep.subr.bf16.mxu0 0
    %632 = vmatpush1.bf16.msra.mxu0 %v629
    %633 = vmatprep.subr.bf16.mxu0 0
    %634 = vmatpush1.bf16.msra.mxu0 0
    %635 = vmatprep.subr.bf16.mxu0 0
    %636 = vmatpush1.bf16.msra.mxu0 0
    %637 = vmatprep.subr.bf16.mxu0 0
    %638 = vmatpush1.bf16.msra.mxu0 0
    %639 = vmatprep.subr.bf16.mxu0 0
    %640 = vmatpush1.bf16.msra.mxu0 0
    %641 = vmatprep.subr.bf16.mxu0 0
    %642 = vmatpush1.bf16.msra.mxu0 0
    %643 = vmatprep.subr.bf16.mxu0 0
    %644 = vmatpush1.bf16.msra.mxu0 0
    %645 = vmatprep.subr.bf16.mxu0 0
    %646 = vmatpush1.bf16.msra.mxu0 0
    %647 = vmatprep.subr.bf16.mxu0 0
    %648 = vmatpush1.bf16.msra.mxu0 0
    %649 = vmatprep.subr.bf16.mxu0 0
    %650 = vmatpush1.bf16.msra.mxu0 0
    %651 = vmatprep.subr.bf16.mxu0 0
    %652 = vmatpush1.bf16.msra.mxu0 0
    %653 = vmatprep.subr.bf16.mxu0 0
    %654 = vmatpush1.bf16.msra.mxu0 0
    %655 = vmatprep.subr.bf16.mxu0 0
    %656 = vmatpush1.bf16.msra.mxu0 0
    %657 = vmatprep.subr.bf16.mxu0 0
    %658 = vmatpush1.bf16.msra.mxu0 0
    %659 = vmatprep.subr.bf16.mxu0 0
    %660 = vmatpush1.bf16.msra.mxu0 0
    %661 = vmatprep.subr.bf16.mxu0 0
    %662 = vmatpush1.bf16.msra.mxu0 0
    %663 = vmatprep.mubr.bf16.mxu0 0
    %664 = vmatmul.mubr.bf16.gmra.mrb[0].mxu0 %v601
    %v665 = vpop.f32.mrb[0].mxu0
    %v666 = vadd.f32 0.0, %v665
    %v667 = vpop.f32.mrb[0].mxu0
    %v668 = vpop.f32.mrb[0].mxu0
    %v669 = vadd.f32 0.0, %v668
    %v670 = vpop.f32.mrb[0].mxu0
    %671 = vmatprep.mubr.bf16.mxu0 0
    %672 = vmatmul.mubr.bf16.gmra.mrb[0].mxu0 %v604
    %v673 = vpop.f32.mrb[0].mxu0
    %v674 = vadd.f32 0.0, %v673
    %v675 = vpop.f32.mrb[0].mxu0
    %v676 = vpop.f32.mrb[0].mxu0
    %v677 = vadd.f32 0.0, %v676
    %v678 = vpop.f32.mrb[0].mxu0
    %679 = vmatprep.mubr.bf16.mxu0 0
    %680 = vmatmul.mubr.bf16.gmra.mrb[0].mxu0 %v607
    %v681 = vpop.f32.mrb[0].mxu0
    %v682 = vadd.f32 0.0, %v681
    %v683 = vpop.f32.mrb[0].mxu0
    %v684 = vpop.f32.mrb[0].mxu0
    %v685 = vadd.f32 0.0, %v684
    %v686 = vpop.f32.mrb[0].mxu0
    %687 = vmatprep.mubr.bf16.mxu0 0
    %688 = vmatmul.mubr.bf16.gmra.mrb[0].mxu0 %v610
    %v689 = vpop.f32.mrb[0].mxu0
    %v690 = vadd.f32 0.0, %v689
    %v691 = vpop.f32.mrb[0].mxu0
    %v692 = vpop.f32.mrb[0].mxu0
    %v693 = vadd.f32 0.0, %v692
    %v694 = vpop.f32.mrb[0].mxu0
    %695 = vmatprep.mubr.bf16.mxu0 0
    %696 = vmatmul.mubr.bf16.gmra.mrb[0].mxu0 %v613
    %v697 = vpop.f32.mrb[0].mxu0
    %v698 = vadd.f32 0.0, %v697
    %v699 = vpop.f32.mrb[0].mxu0
    %v700 = vpop.f32.mrb[0].mxu0
    %v701 = vadd.f32 0.0, %v700
    %v702 = vpop.f32.mrb[0].mxu0
    %703 = vmatprep.mubr.bf16.mxu0 0
    %704 = vmatmul.mubr.bf16.gmra.mrb[0].mxu0 %v616
    %v705 = vpop.f32.mrb[0].mxu0
    %v706 = vadd.f32 0.0, %v705
    %v707 = vpop.f32.mrb[0].mxu0
    %v708 = vpop.f32.mrb[0].mxu0
    %v709 = vadd.f32 0.0, %v708
    %v710 = vpop.f32.mrb[0].mxu0
    %711 = vmatprep.mubr.bf16.mxu0 0
    %712 = vmatmul.mubr.bf16.gmra.mrb[0].mxu0 %v619
    %v713 = vpop.f32.mrb[0].mxu0
    %v714 = vadd.f32 0.0, %v713
    %v715 = vpop.f32.mrb[0].mxu0
    %v716 = vpop.f32.mrb[0].mxu0
    %v717 = vadd.f32 0.0, %v716
    %v718 = vpop.f32.mrb[0].mxu0
    %719 = vmatprep.mubr.bf16.mxu0 0
    %720 = vmatmul.mubr.bf16.gmra.mrb[0].mxu0 %v622
    %v721 = vpop.f32.mrb[0].mxu0
    %v722 = vadd.f32 0.0, %v721
    %v723 = vpop.f32.mrb[0].mxu0
    %v724 = vpop.f32.mrb[0].mxu0
    %v725 = vadd.f32 0.0, %v724
    %v726 = vpop.f32.mrb[0].mxu0
    %727 = vdwg.mxu0
    %v745 = vunpack.c.l.b16 %v157
    %v746 = vunpack.c.l.b16 %v158
    %v747 = vunpack.c.l.b16 %v159
    %v748 = vunpack.c.l.b16 %v160
    %v749 = vunpack.c.l.b16 %v161
    %v750 = vunpack.c.l.b16 %v162
    %v751 = vunpack.c.l.b16 %v163
    %v752 = vunpack.c.l.b16 %v164
    %v753 = vunpack.c.l.b16 %v165
    %v754 = vunpack.c.l.b16 %v166
    %v755 = vunpack.c.l.b16 %v167
    %v756 = vunpack.c.l.b16 %v168
    %v757 = vunpack.c.l.b16 %v169
    %v758 = vunpack.c.l.b16 %v170
    %v759 = vunpack.c.l.b16 %v171
    %v760 = vunpack.c.l.b16 %v172
    %v761 = vunpack.c.l.b16 %v173
    %v762 = vpack.c.b16 %v746, %v745
    %v763 = vpack.c.b16 %v748, %v747
    %v764 = vpack.c.b16 %v750, %v749
    %v765 = vpack.c.b16 %v752, %v751
    %v766 = vpack.c.b16 %v754, %v753
    %v767 = vpack.c.b16 %v756, %v755
    %v768 = vpack.c.b16 %v758, %v757
    %v769 = vpack.c.b16 %v760, %v759
    %v770 = vpack.c.b16 %v761, %v761
    %vm779 = vcmask 31744
    %v781 = vsel %vm779, %v559, 0
    %v784 = vsel %vm779, %v561, 0
    %v787 = vsel %vm779, %v563, 0
    %v790 = vsel %vm779, %v565, 0
    %v793 = vsel %vm779, %v567, 0
    %v796 = vsel %vm779, %v569, 0
    %v799 = vsel %vm779, %v571, 0
    %v802 = vsel %vm779, %v573, 0
    %vm804 = vcmask 1041408
    %v806 = vsel %vm804, %v770, 0
    %808 = vmatprep.subr.bf16.mxu0 0
    %809 = vmatpush1.bf16.msra.mxu0 %v762
    %810 = vmatprep.subr.bf16.mxu0 0
    %811 = vmatpush1.bf16.msra.mxu0 %v763
    %812 = vmatprep.subr.bf16.mxu0 0
    %813 = vmatpush1.bf16.msra.mxu0 %v764
    %814 = vmatprep.subr.bf16.mxu0 0
    %815 = vmatpush1.bf16.msra.mxu0 %v765
    %816 = vmatprep.subr.bf16.mxu0 0
    %817 = vmatpush1.bf16.msra.mxu0 %v766
    %818 = vmatprep.subr.bf16.mxu0 0
    %819 = vmatpush1.bf16.msra.mxu0 %v767
    %820 = vmatprep.subr.bf16.mxu0 0
    %821 = vmatpush1.bf16.msra.mxu0 %v768
    %822 = vmatprep.subr.bf16.mxu0 0
    %823 = vmatpush1.bf16.msra.mxu0 %v769
    %824 = vmatprep.subr.bf16.mxu0 0
    %825 = vmatpush1.bf16.msra.mxu0 %v806
    %826 = vmatprep.subr.bf16.mxu0 0
    %827 = vmatpush1.bf16.msra.mxu0 0
    %828 = vmatprep.subr.bf16.mxu0 0
    %829 = vmatpush1.bf16.msra.mxu0 0
    %830 = vmatprep.subr.bf16.mxu0 0
    %831 = vmatpush1.bf16.msra.mxu0 0
    %832 = vmatprep.subr.bf16.mxu0 0
    %833 = vmatpush1.bf16.msra.mxu0 0
    %834 = vmatprep.subr.bf16.mxu0 0
    %835 = vmatpush1.bf16.msra.mxu0 0
    %836 = vmatprep.subr.bf16.mxu0 0
    %837 = vmatpush1.bf16.msra.mxu0 0
    %838 = vmatprep.subr.bf16.mxu0 0
    %839 = vmatpush1.bf16.msra.mxu0 0
    %840 = vmatprep.mubr.bf16.mxu0 %v781
    %841 = vmatmul.mubr.bf16.gmra.mrb[0].mxu0 %v558
    %v842 = vpop.f32.mrb[0].mxu0
    %v843 = vadd.f32 %v666, %v842
    %v844 = vpop.f32.mrb[0].mxu0
    %v845 = vpop.f32.mrb[0].mxu0
    %v846 = vadd.f32 %v669, %v845
    %v847 = vpop.f32.mrb[0].mxu0
    %848 = vmatprep.mubr.bf16.mxu0 %v784
    %849 = vmatmul.mubr.bf16.gmra.mrb[0].mxu0 %v560
    %v850 = vpop.f32.mrb[0].mxu0
    %v851 = vadd.f32 %v674, %v850
    %v852 = vpop.f32.mrb[0].mxu0
    %v853 = vpop.f32.mrb[0].mxu0
    %v854 = vadd.f32 %v677, %v853
    %v855 = vpop.f32.mrb[0].mxu0
    %856 = vmatprep.mubr.bf16.mxu0 %v787
    %857 = vmatmul.mubr.bf16.gmra.mrb[0].mxu0 %v562
    %v858 = vpop.f32.mrb[0].mxu0
    %v859 = vadd.f32 %v682, %v858
    %v860 = vpop.f32.mrb[0].mxu0
    %v861 = vpop.f32.mrb[0].mxu0
    %v862 = vadd.f32 %v685, %v861
    %v863 = vpop.f32.mrb[0].mxu0
    %864 = vmatprep.mubr.bf16.mxu0 %v790
    %865 = vmatmul.mubr.bf16.gmra.mrb[0].mxu0 %v564
    %v866 = vpop.f32.mrb[0].mxu0
    %v867 = vadd.f32 %v690, %v866
    %v868 = vpop.f32.mrb[0].mxu0
    %v869 = vpop.f32.mrb[0].mxu0
    %v870 = vadd.f32 %v693, %v869
    %v871 = vpop.f32.mrb[0].mxu0
    %872 = vmatprep.mubr.bf16.mxu0 %v793
    %873 = vmatmul.mubr.bf16.gmra.mrb[0].mxu0 %v566
    %v874 = vpop.f32.mrb[0].mxu0
    %v875 = vadd.f32 %v698, %v874
    %v876 = vpop.f32.mrb[0].mxu0
    %v877 = vpop.f32.mrb[0].mxu0
    %v878 = vadd.f32 %v701, %v877
    %v879 = vpop.f32.mrb[0].mxu0
    %880 = vmatprep.mubr.bf16.mxu0 %v796
    %881 = vmatmul.mubr.bf16.gmra.mrb[0].mxu0 %v568
    %v882 = vpop.f32.mrb[0].mxu0
    %v883 = vadd.f32 %v706, %v882
    %v884 = vpop.f32.mrb[0].mxu0
    %v885 = vpop.f32.mrb[0].mxu0
    %v886 = vadd.f32 %v709, %v885
    %v887 = vpop.f32.mrb[0].mxu0
    %888 = vmatprep.mubr.bf16.mxu0 %v799
    %889 = vmatmul.mubr.bf16.gmra.mrb[0].mxu0 %v570
    %v890 = vpop.f32.mrb[0].mxu0
    %v891 = vadd.f32 %v714, %v890
    %v892 = vpop.f32.mrb[0].mxu0
    %v893 = vpop.f32.mrb[0].mxu0
    %v894 = vadd.f32 %v717, %v893
    %v895 = vpop.f32.mrb[0].mxu0
    %896 = vmatprep.mubr.bf16.mxu0 %v802
    %897 = vmatmul.mubr.bf16.gmra.mrb[0].mxu0 %v572
    %v898 = vpop.f32.mrb[0].mxu0
    %v899 = vadd.f32 %v722, %v898
    %v900 = vpop.f32.mrb[0].mxu0
    %v901 = vpop.f32.mrb[0].mxu0
    %v902 = vadd.f32 %v725, %v901
    %v903 = vpop.f32.mrb[0].mxu0
    %904 = vdwg.mxu0
    %v905 = vld [vmem:[%s5] sm:$0x1]
    %v907 = vlaneseq
    %v908 = vshrl.u32 %v907, 7
    %v909 = vsub.s32 0, %v908
    %v910 = vrot.slane %v905, %v909
    %v912 = vadd.f32 %v843, %v910
    %v913 = vadd.f32 %v846, %v910
    %v914 = vadd.f32 %v851, %v910
    %v915 = vadd.f32 %v854, %v910
    %v916 = vadd.f32 %v859, %v910
    %v917 = vadd.f32 %v862, %v910
    %v918 = vadd.f32 %v867, %v910
    %v919 = vadd.f32 %v870, %v910
    %v920 = vadd.f32 %v875, %v910
    %v921 = vadd.f32 %v878, %v910
    %v922 = vadd.f32 %v883, %v910
    %v923 = vadd.f32 %v886, %v910
    %v924 = vadd.f32 %v891, %v910
    %v925 = vadd.f32 %v894, %v910
    %v926 = vadd.f32 %v899, %v910
    %v927 = vadd.f32 %v902, %v910
    %v928 = vtanh.pop %v912
    %v929 = vtanh.pop %v913
    %v930 = vtanh.pop %v914
    %v931 = vtanh.pop %v915
    %v932 = vtanh.pop %v916
    %v933 = vtanh.pop %v917
    %v934 = vtanh.pop %v918
    %v935 = vtanh.pop %v919
    %v936 = vtanh.pop %v920
    %v937 = vtanh.pop %v921
    %v938 = vtanh.pop %v922
    %v939 = vtanh.pop %v923
    %v940 = vtanh.pop %v924
    %v941 = vtanh.pop %v925
    %v942 = vtanh.pop %v926
    %v943 = vtanh.pop %v927
    %v944 = vld [vmem:[%s6] sm:$0xff]
    %v945 = vpack.c.bf16 %v929, %v928
    %v946 = vpack.c.bf16 %v931, %v930
    %v947 = vpack.c.bf16 %v933, %v932
    %v948 = vpack.c.bf16 %v935, %v934
    %v949 = vpack.c.bf16 %v937, %v936
    %v950 = vpack.c.bf16 %v939, %v938
    %v951 = vpack.c.bf16 %v941, %v940
    %v952 = vpack.c.bf16 %v943, %v942
    %v953 = vld [vmem:[%s2] sm:$0xff]
    %v954 = vld [vmem:[%s2 + $0x8] sm:$0xff]
    %v955 = vld [vmem:[%s2 + $0x10] sm:$0xff]
    %v956 = vld [vmem:[%s2 + $0x18] sm:$0xff]
    %v957 = vld [vmem:[%s2 + $0x20] sm:$0xff]
    %v958 = vld [vmem:[%s2 + $0x28] sm:$0xff]
    %v959 = vld [vmem:[%s2 + $0x30] sm:$0xff]
    %v960 = vld [vmem:[%s2 + $0x38] sm:$0xff]
    %v961 = vld [vmem:[%s2 + $0x40] sm:$0xff]
    %v962 = vld [vmem:[%s2 + $0x48] sm:$0xff]
    %v963 = vld [vmem:[%s2 + $0x50] sm:$0xff]
    %v964 = vld [vmem:[%s2 + $0x58] sm:$0xff]
    %v965 = vld [vmem:[%s2 + $0x60] sm:$0xff]
    %v966 = vld [vmem:[%s2 + $0x68] sm:$0xff]
    %v967 = vld [vmem:[%s2 + $0x70] sm:$0xff]
    %v968 = vld [vmem:[%s2 + $0x78] sm:$0xff]
    %v969 = vld [vmem:[%s7] sm:$0xff]
    %v970 = vld [vmem:[%s7 + $0x8] sm:$0xff]
    %v971 = vld [vmem:[%s7 + $0x10] sm:$0xff]
    %v972 = vld [vmem:[%s7 + $0x18] sm:$0xff]
    %v973 = vpack.c.bf16 %v954, %v953
    %v974 = vpack.c.bf16 %v956, %v955
    %v975 = vpack.c.bf16 %v958, %v957
    %v976 = vpack.c.bf16 %v960, %v959
    %v977 = vpack.c.bf16 %v962, %v961
    %v978 = vpack.c.bf16 %v964, %v963
    %v979 = vpack.c.bf16 %v966, %v965
    %v980 = vpack.c.bf16 %v968, %v967
    %v985 = vunpack.c.l.b16 %v969
    %v986 = vunpack.c.h.b16 %v969
    %v987 = vunpack.c.l.b16 %v970
    %v988 = vunpack.c.h.b16 %v970
    %v989 = vunpack.c.l.b16 %v971
    %v990 = vunpack.c.h.b16 %v971
    %v991 = vunpack.c.l.b16 %v972
    %v992 = vunpack.c.h.b16 %v972
    %v993 = vpack.c.b16 %v987, %v985
    %v994 = vpack.c.b16 %v988, %v986
    %v995 = vpack.c.b16 %v991, %v989
    %v996 = vpack.c.b16 %v992, %v990
    %vm1001 = vcmask 261120
    %v1003 = vsel %vm1001, %v973, 0
    %v1006 = vsel %vm1001, %v974, 0
    %v1009 = vsel %vm1001, %v975, 0
    %v1012 = vsel %vm1001, %v976, 0
    %v1015 = vsel %vm1001, %v977, 0
    %v1018 = vsel %vm1001, %v978, 0
    %v1021 = vsel %vm1001, %v979, 0
    %v1024 = vsel %vm1001, %v980, 0
    %1026 = vmatprep.subr.bf16.mxu0 %v994
    %1027 = vmatpush1.bf16.msra.mxu0 %v993
    %1028 = vmatprep.subr.bf16.mxu0 %v996
    %1029 = vmatpush1.bf16.msra.mxu0 %v995
    %1030 = vmatprep.subr.bf16.mxu0 0
    %1031 = vmatpush1.bf16.msra.mxu0 0
    %1032 = vmatprep.subr.bf16.mxu0 0
    %1033 = vmatpush1.bf16.msra.mxu0 0
    %1034 = vmatprep.subr.bf16.mxu0 0
    %1035 = vmatpush1.bf16.msra.mxu0 0
    %1036 = vmatprep.subr.bf16.mxu0 0
    %1037 = vmatpush1.bf16.msra.mxu0 0
    %1038 = vmatprep.subr.bf16.mxu0 0
    %1039 = vmatpush1.bf16.msra.mxu0 0
    %1040 = vmatprep.subr.bf16.mxu0 0
    %1041 = vmatpush1.bf16.msra.mxu0 0
    %1042 = vmatprep.subr.bf16.mxu0 0
    %1043 = vmatpush1.bf16.msra.mxu0 0
    %1044 = vmatprep.subr.bf16.mxu0 0
    %1045 = vmatpush1.bf16.msra.mxu0 0
    %1046 = vmatprep.subr.bf16.mxu0 0
    %1047 = vmatpush1.bf16.msra.mxu0 0
    %1048 = vmatprep.subr.bf16.mxu0 0
    %1049 = vmatpush1.bf16.msra.mxu0 0
    %1050 = vmatprep.subr.bf16.mxu0 0
    %1051 = vmatpush1.bf16.msra.mxu0 0
    %1052 = vmatprep.subr.bf16.mxu0 0
    %1053 = vmatpush1.bf16.msra.mxu0 0
    %1054 = vmatprep.subr.bf16.mxu0 0
    %1055 = vmatpush1.bf16.msra.mxu0 0
    %1056 = vmatprep.subr.bf16.mxu0 0
    %1057 = vmatpush1.bf16.msra.mxu0 0
    %1058 = vmatprep.mubr.bf16.mxu0 0
    %1059 = vmatmul.mubr.bf16.gmra.mrb[0].mxu0 %v1003
    %v1060 = vpop.f32.mrb[0].mxu0
    %v1061 = vadd.f32 0.0, %v1060
    %v1062 = vpop.f32.mrb[0].mxu0
    %v1063 = vadd.f32 0.0, %v1062
    %v1064 = vpop.f32.mrb[0].mxu0
    %v1065 = vadd.f32 0.0, %v1064
    %v1066 = vpop.f32.mrb[0].mxu0
    %v1067 = vadd.f32 0.0, %v1066
    %1068 = vmatprep.mubr.bf16.mxu0 0
    %1069 = vmatmul.mubr.bf16.gmra.mrb[0].mxu0 %v1006
    %v1070 = vpop.f32.mrb[0].mxu0
    %v1071 = vadd.f32 0.0, %v1070
    %v1072 = vpop.f32.mrb[0].mxu0
    %v1073 = vadd.f32 0.0, %v1072
    %v1074 = vpop.f32.mrb[0].mxu0
    %v1075 = vadd.f32 0.0, %v1074
    %v1076 = vpop.f32.mrb[0].mxu0
    %v1077 = vadd.f32 0.0, %v1076
    %1078 = vmatprep.mubr.bf16.mxu0 0
    %1079 = vmatmul.mubr.bf16.gmra.mrb[0].mxu0 %v1009
    %v1080 = vpop.f32.mrb[0].mxu0
    %v1081 = vadd.f32 0.0, %v1080
    %v1082 = vpop.f32.mrb[0].mxu0
    %v1083 = vadd.f32 0.0, %v1082
    %v1084 = vpop.f32.mrb[0].mxu0
    %v1085 = vadd.f32 0.0, %v1084
    %v1086 = vpop.f32.mrb[0].mxu0
    %v1087 = vadd.f32 0.0, %v1086
    %1088 = vmatprep.mubr.bf16.mxu0 0
    %1089 = vmatmul.mubr.bf16.gmra.mrb[0].mxu0 %v1012
    %v1090 = vpop.f32.mrb[0].mxu0
    %v1091 = vadd.f32 0.0, %v1090
    %v1092 = vpop.f32.mrb[0].mxu0
    %v1093 = vadd.f32 0.0, %v1092
    %v1094 = vpop.f32.mrb[0].mxu0
    %v1095 = vadd.f32 0.0, %v1094
    %v1096 = vpop.f32.mrb[0].mxu0
    %v1097 = vadd.f32 0.0, %v1096
    %1098 = vmatprep.mubr.bf16.mxu0 0
    %1099 = vmatmul.mubr.bf16.gmra.mrb[0].mxu0 %v1015
    %v1100 = vpop.f32.mrb[0].mxu0
    %v1101 = vadd.f32 0.0, %v1100
    %v1102 = vpop.f32.mrb[0].mxu0
    %v1103 = vadd.f32 0.0, %v1102
    %v1104 = vpop.f32.mrb[0].mxu0
    %v1105 = vadd.f32 0.0, %v1104
    %v1106 = vpop.f32.mrb[0].mxu0
    %v1107 = vadd.f32 0.0, %v1106
    %1108 = vmatprep.mubr.bf16.mxu0 0
    %1109 = vmatmul.mubr.bf16.gmra.mrb[0].mxu0 %v1018
    %v1110 = vpop.f32.mrb[0].mxu0
    %v1111 = vadd.f32 0.0, %v1110
    %v1112 = vpop.f32.mrb[0].mxu0
    %v1113 = vadd.f32 0.0, %v1112
    %v1114 = vpop.f32.mrb[0].mxu0
    %v1115 = vadd.f32 0.0, %v1114
    %v1116 = vpop.f32.mrb[0].mxu0
    %v1117 = vadd.f32 0.0, %v1116
    %1118 = vmatprep.mubr.bf16.mxu0 0
    %1119 = vmatmul.mubr.bf16.gmra.mrb[0].mxu0 %v1021
    %v1120 = vpop.f32.mrb[0].mxu0
    %v1121 = vadd.f32 0.0, %v1120
    %v1122 = vpop.f32.mrb[0].mxu0
    %v1123 = vadd.f32 0.0, %v1122
    %v1124 = vpop.f32.mrb[0].mxu0
    %v1125 = vadd.f32 0.0, %v1124
    %v1126 = vpop.f32.mrb[0].mxu0
    %v1127 = vadd.f32 0.0, %v1126
    %1128 = vmatprep.mubr.bf16.mxu0 0
    %1129 = vmatmul.mubr.bf16.gmra.mrb[0].mxu0 %v1024
    %v1130 = vpop.f32.mrb[0].mxu0
    %v1131 = vadd.f32 0.0, %v1130
    %v1132 = vpop.f32.mrb[0].mxu0
    %v1133 = vadd.f32 0.0, %v1132
    %v1134 = vpop.f32.mrb[0].mxu0
    %v1135 = vadd.f32 0.0, %v1134
    %v1136 = vpop.f32.mrb[0].mxu0
    %v1137 = vadd.f32 0.0, %v1136
    %1138 = vdwg.mxu0
    %v1140 = vunpack.c.l.b16 %v944
    %v1141 = vunpack.c.h.b16 %v944
    %v1142 = vpack.c.b16 %v1140, %v1140
    %v1143 = vpack.c.b16 %v1141, %v1141
    %v1145 = vsel %vm599, %v945, 0
    %v1148 = vsel %vm599, %v946, 0
    %v1151 = vsel %vm599, %v947, 0
    %v1154 = vsel %vm599, %v948, 0
    %v1157 = vsel %vm599, %v949, 0
    %v1160 = vsel %vm599, %v950, 0
    %v1163 = vsel %vm599, %v951, 0
    %v1166 = vsel %vm599, %v952, 0
    %v1169 = vand.u32 %v1142, %v627
    %v1172 = vand.u32 %v1143, %v627
    %1174 = vmatprep.subr.bf16.mxu0 %v1172
    %1175 = vmatpush1.bf16.msra.mxu0 %v1169
    %1176 = vmatprep.subr.bf16.mxu0 0
    %1177 = vmatpush1.bf16.msra.mxu0 0
    %1178 = vmatprep.subr.bf16.mxu0 0
    %1179 = vmatpush1.bf16.msra.mxu0 0
    %1180 = vmatprep.subr.bf16.mxu0 0
    %1181 = vmatpush1.bf16.msra.mxu0 0
    %1182 = vmatprep.subr.bf16.mxu0 0
    %1183 = vmatpush1.bf16.msra.mxu0 0
    %1184 = vmatprep.subr.bf16.mxu0 0
    %1185 = vmatpush1.bf16.msra.mxu0 0
    %1186 = vmatprep.subr.bf16.mxu0 0
    %1187 = vmatpush1.bf16.msra.mxu0 0
    %1188 = vmatprep.subr.bf16.mxu0 0
    %1189 = vmatpush1.bf16.msra.mxu0 0
    %1190 = vmatprep.subr.bf16.mxu0 0
    %1191 = vmatpush1.bf16.msra.mxu0 0
    %1192 = vmatprep.subr.bf16.mxu0 0
    %1193 = vmatpush1.bf16.msra.mxu0 0
    %1194 = vmatprep.subr.bf16.mxu0 0
    %1195 = vmatpush1.bf16.msra.mxu0 0
    %1196 = vmatprep.subr.bf16.mxu0 0
    %1197 = vmatpush1.bf16.msra.mxu0 0
    %1198 = vmatprep.subr.bf16.mxu0 0
    %1199 = vmatpush1.bf16.msra.mxu0 0
    %1200 = vmatprep.subr.bf16.mxu0 0
    %1201 = vmatpush1.bf16.msra.mxu0 0
    %1202 = vmatprep.subr.bf16.mxu0 0
    %1203 = vmatpush1.bf16.msra.mxu0 0
    %1204 = vmatprep.subr.bf16.mxu0 0
    %1205 = vmatpush1.bf16.msra.mxu0 0
    %1206 = vmatprep.mubr.bf16.mxu0 0
    %1207 = vmatmul.mubr.bf16.gmra.mrb[0].mxu0 %v1145
    %v1208 = vpop.f32.mrb[0].mxu0
    %v1209 = vadd.f32 %v1061, %v1208
    %v1210 = vpop.f32.mrb[0].mxu0
    %v1211 = vadd.f32 %v1063, %v1210
    %v1212 = vpop.f32.mrb[0].mxu0
    %v1213 = vadd.f32 %v1065, %v1212
    %v1214 = vpop.f32.mrb[0].mxu0
    %v1215 = vadd.f32 %v1067, %v1214
    %1216 = vmatprep.mubr.bf16.mxu0 0
    %1217 = vmatmul.mubr.bf16.gmra.mrb[0].mxu0 %v1148
    %v1218 = vpop.f32.mrb[0].mxu0
    %v1219 = vadd.f32 %v1071, %v1218
    %v1220 = vpop.f32.mrb[0].mxu0
    %v1221 = vadd.f32 %v1073, %v1220
    %v1222 = vpop.f32.mrb[0].mxu0
    %v1223 = vadd.f32 %v1075, %v1222
    %v1224 = vpop.f32.mrb[0].mxu0
    %v1225 = vadd.f32 %v1077, %v1224
    %1226 = vmatprep.mubr.bf16.mxu0 0
    %1227 = vmatmul.mubr.bf16.gmra.mrb[0].mxu0 %v1151
    %v1228 = vpop.f32.mrb[0].mxu0
    %v1229 = vadd.f32 %v1081, %v1228
    %v1230 = vpop.f32.mrb[0].mxu0
    %v1231 = vadd.f32 %v1083, %v1230
    %v1232 = vpop.f32.mrb[0].mxu0
    %v1233 = vadd.f32 %v1085, %v1232
    %v1234 = vpop.f32.mrb[0].mxu0
    %v1235 = vadd.f32 %v1087, %v1234
    %1236 = vmatprep.mubr.bf16.mxu0 0
    %1237 = vmatmul.mubr.bf16.gmra.mrb[0].mxu0 %v1154
    %v1238 = vpop.f32.mrb[0].mxu0
    %v1239 = vadd.f32 %v1091, %v1238
    %v1240 = vpop.f32.mrb[0].mxu0
    %v1241 = vadd.f32 %v1093, %v1240
    %v1242 = vpop.f32.mrb[0].mxu0
    %v1243 = vadd.f32 %v1095, %v1242
    %v1244 = vpop.f32.mrb[0].mxu0
    %v1245 = vadd.f32 %v1097, %v1244
    %1246 = vmatprep.mubr.bf16.mxu0 0
    %1247 = vmatmul.mubr.bf16.gmra.mrb[0].mxu0 %v1157
    %v1248 = vpop.f32.mrb[0].mxu0
    %v1249 = vadd.f32 %v1101, %v1248
    %v1250 = vpop.f32.mrb[0].mxu0
    %v1251 = vadd.f32 %v1103, %v1250
    %v1252 = vpop.f32.mrb[0].mxu0
    %v1253 = vadd.f32 %v1105, %v1252
    %v1254 = vpop.f32.mrb[0].mxu0
    %v1255 = vadd.f32 %v1107, %v1254
    %1256 = vmatprep.mubr.bf16.mxu0 0
    %1257 = vmatmul.mubr.bf16.gmra.mrb[0].mxu0 %v1160
    %v1258 = vpop.f32.mrb[0].mxu0
    %v1259 = vadd.f32 %v1111, %v1258
    %v1260 = vpop.f32.mrb[0].mxu0
    %v1261 = vadd.f32 %v1113, %v1260
    %v1262 = vpop.f32.mrb[0].mxu0
    %v1263 = vadd.f32 %v1115, %v1262
    %v1264 = vpop.f32.mrb[0].mxu0
    %v1265 = vadd.f32 %v1117, %v1264
    %1266 = vmatprep.mubr.bf16.mxu0 0
    %1267 = vmatmul.mubr.bf16.gmra.mrb[0].mxu0 %v1163
    %v1268 = vpop.f32.mrb[0].mxu0
    %v1269 = vadd.f32 %v1121, %v1268
    %v1270 = vpop.f32.mrb[0].mxu0
    %v1271 = vadd.f32 %v1123, %v1270
    %v1272 = vpop.f32.mrb[0].mxu0
    %v1273 = vadd.f32 %v1125, %v1272
    %v1274 = vpop.f32.mrb[0].mxu0
    %v1275 = vadd.f32 %v1127, %v1274
    %1276 = vmatprep.mubr.bf16.mxu0 0
    %1277 = vmatmul.mubr.bf16.gmra.mrb[0].mxu0 %v1166
    %v1278 = vpop.f32.mrb[0].mxu0
    %v1279 = vadd.f32 %v1131, %v1278
    %v1280 = vpop.f32.mrb[0].mxu0
    %v1281 = vadd.f32 %v1133, %v1280
    %v1282 = vpop.f32.mrb[0].mxu0
    %v1283 = vadd.f32 %v1135, %v1282
    %v1284 = vpop.f32.mrb[0].mxu0
    %v1285 = vadd.f32 %v1137, %v1284
    %1286 = vdwg.mxu0
    %v1287 = vld [vmem:[%s8] sm:$0x3]
    %v1289 = vlaneseq
    %v1290 = vshrl.u32 %v1289, 7
    %v1291 = vsub.s32 0, %v1290
    %v1292 = vrot.slane %v1287, %v1291
    %v1293 = vlaneseq
    %v1294 = vshrl.u32 %v1293, 7
    %v1295 = vsub.s32 1, %v1294
    %v1296 = vrot.slane %v1287, %v1295
    %v1299 = vadd.f32 %v1209, %v1292
    %v1300 = vadd.f32 %v1211, %v1296
    %v1301 = vadd.f32 %v1213, %v1292
    %v1302 = vadd.f32 %v1215, %v1296
    %v1303 = vadd.f32 %v1219, %v1292
    %v1304 = vadd.f32 %v1221, %v1296
    %v1305 = vadd.f32 %v1223, %v1292
    %v1306 = vadd.f32 %v1225, %v1296
    %v1307 = vadd.f32 %v1229, %v1292
    %v1308 = vadd.f32 %v1231, %v1296
    %v1309 = vadd.f32 %v1233, %v1292
    %v1310 = vadd.f32 %v1235, %v1296
    %v1311 = vadd.f32 %v1239, %v1292
    %v1312 = vadd.f32 %v1241, %v1296
    %v1313 = vadd.f32 %v1243, %v1292
    %v1314 = vadd.f32 %v1245, %v1296
    %v1315 = vadd.f32 %v1249, %v1292
    %v1316 = vadd.f32 %v1251, %v1296
    %v1317 = vadd.f32 %v1253, %v1292
    %v1318 = vadd.f32 %v1255, %v1296
    %v1319 = vadd.f32 %v1259, %v1292
    %v1320 = vadd.f32 %v1261, %v1296
    %v1321 = vadd.f32 %v1263, %v1292
    %v1322 = vadd.f32 %v1265, %v1296
    %v1323 = vadd.f32 %v1269, %v1292
    %v1324 = vadd.f32 %v1271, %v1296
    %v1325 = vadd.f32 %v1273, %v1292
    %v1326 = vadd.f32 %v1275, %v1296
    %v1327 = vadd.f32 %v1279, %v1292
    %v1328 = vadd.f32 %v1281, %v1296
    %v1329 = vadd.f32 %v1283, %v1292
    %v1330 = vadd.f32 %v1285, %v1296
    %vm1331 = vcmp.gt.f32.partialorder %v1299, 0.0
    %vm1332 = vcmp.gt.f32.partialorder %v1300, 0.0
    %vm1333 = vcmp.gt.f32.partialorder %v1301, 0.0
    %vm1334 = vcmp.gt.f32.partialorder %v1302, 0.0
    %vm1335 = vcmp.gt.f32.partialorder %v1303, 0.0
    %vm1336 = vcmp.gt.f32.partialorder %v1304, 0.0
    %vm1337 = vcmp.gt.f32.partialorder %v1305, 0.0
    %vm1338 = vcmp.gt.f32.partialorder %v1306, 0.0
    %vm1339 = vcmp.gt.f32.partialorder %v1307, 0.0
    %vm1340 = vcmp.gt.f32.partialorder %v1308, 0.0
    %vm1341 = vcmp.gt.f32.partialorder %v1309, 0.0
    %vm1342 = vcmp.gt.f32.partialorder %v1310, 0.0
    %vm1343 = vcmp.gt.f32.partialorder %v1311, 0.0
    %vm1344 = vcmp.gt.f32.partialorder %v1312, 0.0
    %vm1345 = vcmp.gt.f32.partialorder %v1313, 0.0
    %vm1346 = vcmp.gt.f32.partialorder %v1314, 0.0
    %vm1347 = vcmp.gt.f32.partialorder %v1315, 0.0
    %vm1348 = vcmp.gt.f32.partialorder %v1316, 0.0
    %vm1349 = vcmp.gt.f32.partialorder %v1317, 0.0
    %vm1350 = vcmp.gt.f32.partialorder %v1318, 0.0
    %vm1351 = vcmp.gt.f32.partialorder %v1319, 0.0
    %vm1352 = vcmp.gt.f32.partialorder %v1320, 0.0
    %vm1353 = vcmp.gt.f32.partialorder %v1321, 0.0
    %vm1354 = vcmp.gt.f32.partialorder %v1322, 0.0
    %vm1355 = vcmp.gt.f32.partialorder %v1323, 0.0
    %vm1356 = vcmp.gt.f32.partialorder %v1324, 0.0
    %vm1357 = vcmp.gt.f32.partialorder %v1325, 0.0
    %vm1358 = vcmp.gt.f32.partialorder %v1326, 0.0
    %vm1359 = vcmp.gt.f32.partialorder %v1327, 0.0
    %vm1360 = vcmp.gt.f32.partialorder %v1328, 0.0
    %vm1361 = vcmp.gt.f32.partialorder %v1329, 0.0
    %vm1362 = vcmp.gt.f32.partialorder %v1330, 0.0
    %v1363 = vmul.f32 %v1299, 1.442695
    %v1364 = vpow.pop %v1363
    %v1365 = vmul.f32 %v1300, 1.442695
    %v1366 = vpow.pop %v1365
    %v1367 = vmul.f32 %v1301, 1.442695
    %v1368 = vpow.pop %v1367
    %v1369 = vmul.f32 %v1302, 1.442695
    %v1370 = vpow.pop %v1369
    %v1371 = vmul.f32 %v1303, 1.442695
    %v1372 = vpow.pop %v1371
    %v1373 = vmul.f32 %v1304, 1.442695
    %v1374 = vpow.pop %v1373
    %v1375 = vmul.f32 %v1305, 1.442695
    %v1376 = vpow.pop %v1375
    %v1377 = vmul.f32 %v1306, 1.442695
    %v1378 = vpow.pop %v1377
    %v1379 = vmul.f32 %v1307, 1.442695
    %v1380 = vpow.pop %v1379
    %v1381 = vmul.f32 %v1308, 1.442695
    %v1382 = vpow.pop %v1381
    %v1383 = vmul.f32 %v1309, 1.442695
    %v1384 = vpow.pop %v1383
    %v1385 = vmul.f32 %v1310, 1.442695
    %v1386 = vpow.pop %v1385
    %v1387 = vmul.f32 %v1311, 1.442695
    %v1388 = vpow.pop %v1387
    %v1389 = vmul.f32 %v1312, 1.442695
    %v1390 = vpow.pop %v1389
    %v1391 = vmul.f32 %v1313, 1.442695
    %v1392 = vpow.pop %v1391
    %v1393 = vmul.f32 %v1314, 1.442695
    %v1394 = vpow.pop %v1393
    %v1395 = vmul.f32 %v1315, 1.442695
    %v1396 = vpow.pop %v1395
    %v1397 = vmul.f32 %v1316, 1.442695
    %v1398 = vpow.pop %v1397
    %v1399 = vmul.f32 %v1317, 1.442695
    %v1400 = vpow.pop %v1399
    %v1401 = vmul.f32 %v1318, 1.442695
    %v1402 = vpow.pop %v1401
    %v1403 = vmul.f32 %v1319, 1.442695
    %v1404 = vpow.pop %v1403
    %v1405 = vmul.f32 %v1320, 1.442695
    %v1406 = vpow.pop %v1405
    %v1407 = vmul.f32 %v1321, 1.442695
    %v1408 = vpow.pop %v1407
    %v1409 = vmul.f32 %v1322, 1.442695
    %v1410 = vpow.pop %v1409
    %v1411 = vmul.f32 %v1323, 1.442695
    %v1412 = vpow.pop %v1411
    %v1413 = vmul.f32 %v1324, 1.442695
    %v1414 = vpow.pop %v1413
    %v1415 = vmul.f32 %v1325, 1.442695
    %v1416 = vpow.pop %v1415
    %v1417 = vmul.f32 %v1326, 1.442695
    %v1418 = vpow.pop %v1417
    %v1419 = vmul.f32 %v1327, 1.442695
    %v1420 = vpow.pop %v1419
    %v1421 = vmul.f32 %v1328, 1.442695
    %v1422 = vpow.pop %v1421
    %v1423 = vmul.f32 %v1329, 1.442695
    %v1424 = vpow.pop %v1423
    %v1425 = vmul.f32 %v1330, 1.442695
    %v1426 = vpow.pop %v1425
    %v1427 = vsub.f32 %v1364, 1.0
    %v1428 = vsub.f32 %v1366, 1.0
    %v1429 = vsub.f32 %v1368, 1.0
    %v1430 = vsub.f32 %v1370, 1.0
    %v1431 = vsub.f32 %v1372, 1.0
    %v1432 = vsub.f32 %v1374, 1.0
    %v1433 = vsub.f32 %v1376, 1.0
    %v1434 = vsub.f32 %v1378, 1.0
    %v1435 = vsub.f32 %v1380, 1.0
    %v1436 = vsub.f32 %v1382, 1.0
    %v1437 = vsub.f32 %v1384, 1.0
    %v1438 = vsub.f32 %v1386, 1.0
    %v1439 = vsub.f32 %v1388, 1.0
    %v1440 = vsub.f32 %v1390, 1.0
    %v1441 = vsub.f32 %v1392, 1.0
    %v1442 = vsub.f32 %v1394, 1.0
    %v1443 = vsub.f32 %v1396, 1.0
    %v1444 = vsub.f32 %v1398, 1.0
    %v1445 = vsub.f32 %v1400, 1.0
    %v1446 = vsub.f32 %v1402, 1.0
    %v1447 = vsub.f32 %v1404, 1.0
    %v1448 = vsub.f32 %v1406, 1.0
    %v1449 = vsub.f32 %v1408, 1.0
    %v1450 = vsub.f32 %v1410, 1.0
    %v1451 = vsub.f32 %v1412, 1.0
    %v1452 = vsub.f32 %v1414, 1.0
    %v1453 = vsub.f32 %v1416, 1.0
    %v1454 = vsub.f32 %v1418, 1.0
    %v1455 = vsub.f32 %v1420, 1.0
    %v1456 = vsub.f32 %v1422, 1.0
    %v1457 = vsub.f32 %v1424, 1.0
    %v1458 = vsub.f32 %v1426, 1.0
    %v1459 = vsel %vm1331, %v1299, %v1427
    %v1460 = vsel %vm1332, %v1300, %v1428
    %v1461 = vsel %vm1333, %v1301, %v1429
    %v1462 = vsel %vm1334, %v1302, %v1430
    %v1463 = vsel %vm1335, %v1303, %v1431
    %v1464 = vsel %vm1336, %v1304, %v1432
    %v1465 = vsel %vm1337, %v1305, %v1433
    %v1466 = vsel %vm1338, %v1306, %v1434
    %v1467 = vsel %vm1339, %v1307, %v1435
    %v1468 = vsel %vm1340, %v1308, %v1436
    %v1469 = vsel %vm1341, %v1309, %v1437
    %v1470 = vsel %vm1342, %v1310, %v1438
    %v1471 = vsel %vm1343, %v1311, %v1439
    %v1472 = vsel %vm1344, %v1312, %v1440
    %v1473 = vsel %vm1345, %v1313, %v1441
    %v1474 = vsel %vm1346, %v1314, %v1442
    %v1475 = vsel %vm1347, %v1315, %v1443
    %v1476 = vsel %vm1348, %v1316, %v1444
    %v1477 = vsel %vm1349, %v1317, %v1445
    %v1478 = vsel %vm1350, %v1318, %v1446
    %v1479 = vsel %vm1351, %v1319, %v1447
    %v1480 = vsel %vm1352, %v1320, %v1448
    %v1481 = vsel %vm1353, %v1321, %v1449
    %v1482 = vsel %vm1354, %v1322, %v1450
    %v1483 = vsel %vm1355, %v1323, %v1451
    %v1484 = vsel %vm1356, %v1324, %v1452
    %v1485 = vsel %vm1357, %v1325, %v1453
    %v1486 = vsel %vm1358, %v1326, %v1454
    %v1487 = vsel %vm1359, %v1327, %v1455
    %v1488 = vsel %vm1360, %v1328, %v1456
    %v1489 = vsel %vm1361, %v1329, %v1457
    %v1490 = vsel %vm1362, %v1330, %v1458
    %v1491 = vld [vmem:[#allocation2] sm:$0xff]
    %v1492 = vld [vmem:[#allocation2 + $0x8] sm:$0xff]
    %v1493 = vld [vmem:[#allocation2 + $0x10] sm:$0xff]
    %v1494 = vld [vmem:[#allocation2 + $0x18] sm:$0xff]
    %v1495 = vld [vmem:[#allocation2 + $0x20] sm:$0xff]
    %v1496 = vld [vmem:[#allocation2 + $0x28] sm:$0xff]
    %v1497 = vld [vmem:[#allocation2 + $0x30] sm:$0xff]
    %v1498 = vld [vmem:[#allocation2 + $0x38] sm:$0xff]
    %v1499 = vld [vmem:[#allocation2 + $0x40] sm:$0xff]
    %v1500 = vld [vmem:[#allocation2 + $0x48] sm:$0xff]
    %v1501 = vld [vmem:[#allocation2 + $0x50] sm:$0xff]
    %v1502 = vld [vmem:[#allocation2 + $0x58] sm:$0xff]
    %v1503 = vld [vmem:[#allocation2 + $0x60] sm:$0xff]
    %v1504 = vld [vmem:[#allocation2 + $0x68] sm:$0xff]
    %v1505 = vld [vmem:[#allocation2 + $0x70] sm:$0xff]
    %v1506 = vld [vmem:[#allocation2 + $0x78] sm:$0xff]
    %v1507 = vld [vmem:[#allocation2 + $0x80] sm:$0xff]
    %v1508 = vld [vmem:[#allocation2 + $0x88] sm:$0xff]
    %v1509 = vld [vmem:[#allocation2 + $0x90] sm:$0xff]
    %v1510 = vld [vmem:[#allocation2 + $0x98] sm:$0xff]
    %v1511 = vld [vmem:[#allocation2 + $0xa0] sm:$0xff]
    %v1512 = vld [vmem:[#allocation2 + $0xa8] sm:$0xff]
    %v1513 = vld [vmem:[#allocation2 + $0xb0] sm:$0xff]
    %v1514 = vld [vmem:[#allocation2 + $0xb8] sm:$0xff]
    %v1515 = vld [vmem:[#allocation2 + $0xc0] sm:$0xff]
    %v1516 = vld [vmem:[#allocation2 + $0xc8] sm:$0xff]
    %v1517 = vld [vmem:[#allocation2 + $0xd0] sm:$0xff]
    %v1518 = vld [vmem:[#allocation2 + $0xd8] sm:$0xff]
    %v1519 = vld [vmem:[#allocation2 + $0xe0] sm:$0xff]
    %v1520 = vld [vmem:[#allocation2 + $0xe8] sm:$0xff]
    %v1521 = vld [vmem:[#allocation2 + $0xf0] sm:$0xff]
    %v1522 = vld [vmem:[#allocation2 + $0xf8] sm:$0xff]
    %v1523 = vpack.c.bf16 %v1461, %v1459
    %v1524 = vpack.c.bf16 %v1462, %v1460
    %v1525 = vpack.c.bf16 %v1465, %v1463
    %v1526 = vpack.c.bf16 %v1466, %v1464
    %v1527 = vpack.c.bf16 %v1469, %v1467
    %v1528 = vpack.c.bf16 %v1470, %v1468
    %v1529 = vpack.c.bf16 %v1473, %v1471
    %v1530 = vpack.c.bf16 %v1474, %v1472
    %v1531 = vpack.c.bf16 %v1477, %v1475
    %v1532 = vpack.c.bf16 %v1478, %v1476
    %v1533 = vpack.c.bf16 %v1481, %v1479
    %v1534 = vpack.c.bf16 %v1482, %v1480
    %v1535 = vpack.c.bf16 %v1485, %v1483
    %v1536 = vpack.c.bf16 %v1486, %v1484
    %v1537 = vpack.c.bf16 %v1489, %v1487
    %v1538 = vpack.c.bf16 %v1490, %v1488
    %v1539 = vld [vmem:[%s10] sm:$0x3]
    %v1541 = vlaneseq
    %v1542 = vshrl.u32 %v1541, 7
    %v1543 = vsub.s32 0, %v1542
    %v1544 = vrot.slane %v1539, %v1543
    %v1545 = vlaneseq
    %v1546 = vshrl.u32 %v1545, 7
    %v1547 = vsub.s32 1, %v1546
    %v1548 = vrot.slane %v1539, %v1547
    %v1583 = vunpack.c.l.b16 %v1491
    %v1584 = vunpack.c.h.b16 %v1491
    %v1585 = vunpack.c.l.b16 %v1492
    %v1586 = vunpack.c.h.b16 %v1492
    %v1587 = vunpack.c.l.b16 %v1493
    %v1588 = vunpack.c.h.b16 %v1493
    %v1589 = vunpack.c.l.b16 %v1494
    %v1590 = vunpack.c.h.b16 %v1494
    %v1591 = vunpack.c.l.b16 %v1495
    %v1592 = vunpack.c.h.b16 %v1495
    %v1593 = vunpack.c.l.b16 %v1496
    %v1594 = vunpack.c.h.b16 %v1496
    %v1595 = vunpack.c.l.b16 %v1497
    %v1596 = vunpack.c.h.b16 %v1497
    %v1597 = vunpack.c.l.b16 %v1498
    %v1598 = vunpack.c.h.b16 %v1498
    %v1599 = vunpack.c.l.b16 %v1499
    %v1600 = vunpack.c.h.b16 %v1499
    %v1601 = vunpack.c.l.b16 %v1500
    %v1602 = vunpack.c.h.b16 %v1500
    %v1603 = vunpack.c.l.b16 %v1501
    %v1604 = vunpack.c.h.b16 %v1501
    %v1605 = vunpack.c.l.b16 %v1502
    %v1606 = vunpack.c.h.b16 %v1502
    %v1607 = vunpack.c.l.b16 %v1503
    %v1608 = vunpack.c.h.b16 %v1503
    %v1609 = vunpack.c.l.b16 %v1504
    %v1610 = vunpack.c.h.b16 %v1504
    %v1611 = vunpack.c.l.b16 %v1505
    %v1612 = vunpack.c.h.b16 %v1505
    %v1613 = vunpack.c.l.b16 %v1506
    %v1614 = vunpack.c.h.b16 %v1506
    %v1615 = vunpack.c.l.b16 %v1507
    %v1616 = vunpack.c.h.b16 %v1507
    %v1617 = vunpack.c.l.b16 %v1508
    %v1618 = vunpack.c.h.b16 %v1508
    %v1619 = vunpack.c.l.b16 %v1509
    %v1620 = vunpack.c.h.b16 %v1509
    %v1621 = vunpack.c.l.b16 %v1510
    %v1622 = vunpack.c.h.b16 %v1510
    %v1623 = vunpack.c.l.b16 %v1511
    %v1624 = vunpack.c.h.b16 %v1511
    %v1625 = vunpack.c.l.b16 %v1512
    %v1626 = vunpack.c.h.b16 %v1512
    %v1627 = vunpack.c.l.b16 %v1513
    %v1628 = vunpack.c.h.b16 %v1513
    %v1629 = vunpack.c.l.b16 %v1514
    %v1630 = vunpack.c.h.b16 %v1514
    %v1631 = vunpack.c.l.b16 %v1515
    %v1632 = vunpack.c.h.b16 %v1515
    %v1633 = vunpack.c.l.b16 %v1516
    %v1634 = vunpack.c.h.b16 %v1516
    %v1635 = vunpack.c.l.b16 %v1517
    %v1636 = vunpack.c.h.b16 %v1517
    %v1637 = vunpack.c.l.b16 %v1518
    %v1638 = vunpack.c.h.b16 %v1518
    %v1639 = vunpack.c.l.b16 %v1519
    %v1640 = vunpack.c.h.b16 %v1519
    %v1641 = vunpack.c.l.b16 %v1520
    %v1642 = vunpack.c.h.b16 %v1520
    %v1643 = vunpack.c.l.b16 %v1521
    %v1644 = vunpack.c.h.b16 %v1521
    %v1645 = vunpack.c.l.b16 %v1522
    %v1646 = vunpack.c.h.b16 %v1522
    %v1647 = vpack.c.b16 %v1585, %v1583
    %v1648 = vpack.c.b16 %v1586, %v1584
    %v1649 = vpack.c.b16 %v1589, %v1587
    %v1650 = vpack.c.b16 %v1590, %v1588
    %v1651 = vpack.c.b16 %v1593, %v1591
    %v1652 = vpack.c.b16 %v1594, %v1592
    %v1653 = vpack.c.b16 %v1597, %v1595
    %v1654 = vpack.c.b16 %v1598, %v1596
    %v1655 = vpack.c.b16 %v1601, %v1599
    %v1656 = vpack.c.b16 %v1602, %v1600
    %v1657 = vpack.c.b16 %v1605, %v1603
    %v1658 = vpack.c.b16 %v1606, %v1604
    %v1659 = vpack.c.b16 %v1609, %v1607
    %v1660 = vpack.c.b16 %v1610, %v1608
    %v1661 = vpack.c.b16 %v1613, %v1611
    %v1662 = vpack.c.b16 %v1614, %v1612
    %v1663 = vpack.c.b16 %v1617, %v1615
    %v1664 = vpack.c.b16 %v1618, %v1616
    %v1665 = vpack.c.b16 %v1621, %v1619
    %v1666 = vpack.c.b16 %v1622, %v1620
    %v1667 = vpack.c.b16 %v1625, %v1623
    %v1668 = vpack.c.b16 %v1626, %v1624
    %v1669 = vpack.c.b16 %v1629, %v1627
    %v1670 = vpack.c.b16 %v1630, %v1628
    %v1671 = vpack.c.b16 %v1633, %v1631
    %v1672 = vpack.c.b16 %v1634, %v1632
    %v1673 = vpack.c.b16 %v1637, %v1635
    %v1674 = vpack.c.b16 %v1638, %v1636
    %v1675 = vpack.c.b16 %v1641, %v1639
    %v1676 = vpack.c.b16 %v1642, %v1640
    %v1677 = vpack.c.b16 %v1645, %v1643
    %v1678 = vpack.c.b16 %v1646, %v1644
    %1711 = vmatprep.subr.bf16.mxu0 %v1648
    %1712 = vmatpush1.bf16.msra.mxu0 %v1647
    %1713 = vmatprep.subr.bf16.mxu0 %v1650
    %1714 = vmatpush1.bf16.msra.mxu0 %v1649
    %1715 = vmatprep.subr.bf16.mxu0 %v1652
    %1716 = vmatpush1.bf16.msra.mxu0 %v1651
    %1717 = vmatprep.subr.bf16.mxu0 %v1654
    %1718 = vmatpush1.bf16.msra.mxu0 %v1653
    %1719 = vmatprep.subr.bf16.mxu0 %v1656
    %1720 = vmatpush1.bf16.msra.mxu0 %v1655
    %1721 = vmatprep.subr.bf16.mxu0 %v1658
    %1722 = vmatpush1.bf16.msra.mxu0 %v1657
    %1723 = vmatprep.subr.bf16.mxu0 %v1660
    %1724 = vmatpush1.bf16.msra.mxu0 %v1659
    %1725 = vmatprep.subr.bf16.mxu0 %v1662
    %1726 = vmatpush1.bf16.msra.mxu0 %v1661
    %1727 = vmatprep.subr.bf16.mxu0 %v1664
    %1728 = vmatpush1.bf16.msra.mxu0 %v1663
    %1729 = vmatprep.subr.bf16.mxu0 %v1666
    %1730 = vmatpush1.bf16.msra.mxu0 %v1665
    %1731 = vmatprep.subr.bf16.mxu0 %v1668
    %1732 = vmatpush1.bf16.msra.mxu0 %v1667
    %1733 = vmatprep.subr.bf16.mxu0 %v1670
    %1734 = vmatpush1.bf16.msra.mxu0 %v1669
    %1735 = vmatprep.subr.bf16.mxu0 %v1672
    %1736 = vmatpush1.bf16.msra.mxu0 %v1671
    %1737 = vmatprep.subr.bf16.mxu0 %v1674
    %1738 = vmatpush1.bf16.msra.mxu0 %v1673
    %1739 = vmatprep.subr.bf16.mxu0 %v1676
    %1740 = vmatpush1.bf16.msra.mxu0 %v1675
    %1741 = vmatprep.subr.bf16.mxu0 %v1678
    %1742 = vmatpush1.bf16.msra.mxu0 %v1677
    %1743 = vmatprep.mubr.bf16.mxu0 %v1524
    %1744 = vmatmul.mubr.bf16.gmra.mrb[0].mxu0 %v1523
    %v1745 = vpop.f32.mrb[0].mxu0
    %v1746 = vadd.f32 %v1544, %v1745
    %v1747 = vpop.f32.mrb[0].mxu0
    %v1748 = vadd.f32 %v1548, %v1747
    %v1749 = vpop.f32.mrb[0].mxu0
    %v1750 = vadd.f32 %v1544, %v1749
    %v1751 = vpop.f32.mrb[0].mxu0
    %v1752 = vadd.f32 %v1548, %v1751
    %1753 = vmatprep.mubr.bf16.mxu0 %v1526
    %1754 = vmatmul.mubr.bf16.gmra.mrb[0].mxu0 %v1525
    %v1755 = vpop.f32.mrb[0].mxu0
    %v1756 = vadd.f32 %v1544, %v1755
    %v1757 = vpop.f32.mrb[0].mxu0
    %v1758 = vadd.f32 %v1548, %v1757
    %v1759 = vpop.f32.mrb[0].mxu0
    %v1760 = vadd.f32 %v1544, %v1759
    %v1761 = vpop.f32.mrb[0].mxu0
    %v1762 = vadd.f32 %v1548, %v1761
    %1763 = vmatprep.mubr.bf16.mxu0 %v1528
    %1764 = vmatmul.mubr.bf16.gmra.mrb[0].mxu0 %v1527
    %v1765 = vpop.f32.mrb[0].mxu0
    %v1766 = vadd.f32 %v1544, %v1765
    %v1767 = vpop.f32.mrb[0].mxu0
    %v1768 = vadd.f32 %v1548, %v1767
    %v1769 = vpop.f32.mrb[0].mxu0
    %v1770 = vadd.f32 %v1544, %v1769
    %v1771 = vpop.f32.mrb[0].mxu0
    %v1772 = vadd.f32 %v1548, %v1771
    %1773 = vmatprep.mubr.bf16.mxu0 %v1530
    %1774 = vmatmul.mubr.bf16.gmra.mrb[0].mxu0 %v1529
    %v1775 = vpop.f32.mrb[0].mxu0
    %v1776 = vadd.f32 %v1544, %v1775
    %v1777 = vpop.f32.mrb[0].mxu0
    %v1778 = vadd.f32 %v1548, %v1777
    %v1779 = vpop.f32.mrb[0].mxu0
    %v1780 = vadd.f32 %v1544, %v1779
    %v1781 = vpop.f32.mrb[0].mxu0
    %v1782 = vadd.f32 %v1548, %v1781
    %1783 = vmatprep.mubr.bf16.mxu0 %v1532
    %1784 = vmatmul.mubr.bf16.gmra.mrb[0].mxu0 %v1531
    %v1785 = vpop.f32.mrb[0].mxu0
    %v1786 = vadd.f32 %v1544, %v1785
    %v1787 = vpop.f32.mrb[0].mxu0
    %v1788 = vadd.f32 %v1548, %v1787
    %v1789 = vpop.f32.mrb[0].mxu0
    %v1790 = vadd.f32 %v1544, %v1789
    %v1791 = vpop.f32.mrb[0].mxu0
    %v1792 = vadd.f32 %v1548, %v1791
    %1793 = vmatprep.mubr.bf16.mxu0 %v1534
    %1794 = vmatmul.mubr.bf16.gmra.mrb[0].mxu0 %v1533
    %v1795 = vpop.f32.mrb[0].mxu0
    %v1796 = vadd.f32 %v1544, %v1795
    %v1797 = vpop.f32.mrb[0].mxu0
    %v1798 = vadd.f32 %v1548, %v1797
    %v1799 = vpop.f32.mrb[0].mxu0
    %v1800 = vadd.f32 %v1544, %v1799
    %v1801 = vpop.f32.mrb[0].mxu0
    %v1802 = vadd.f32 %v1548, %v1801
    %1803 = vmatprep.mubr.bf16.mxu0 %v1536
    %1804 = vmatmul.mubr.bf16.gmra.mrb[0].mxu0 %v1535
    %v1805 = vpop.f32.mrb[0].mxu0
    %v1806 = vadd.f32 %v1544, %v1805
    %v1807 = vpop.f32.mrb[0].mxu0
    %v1808 = vadd.f32 %v1548, %v1807
    %v1809 = vpop.f32.mrb[0].mxu0
    %v1810 = vadd.f32 %v1544, %v1809
    %v1811 = vpop.f32.mrb[0].mxu0
    %v1812 = vadd.f32 %v1548, %v1811
    %1813 = vmatprep.mubr.bf16.mxu0 %v1538
    %1814 = vmatmul.mubr.bf16.gmra.mrb[0].mxu0 %v1537
    %v1815 = vpop.f32.mrb[0].mxu0
    %v1816 = vadd.f32 %v1544, %v1815
    %v1817 = vpop.f32.mrb[0].mxu0
    %v1818 = vadd.f32 %v1548, %v1817
    %v1819 = vpop.f32.mrb[0].mxu0
    %v1820 = vadd.f32 %v1544, %v1819
    %v1821 = vpop.f32.mrb[0].mxu0
    %v1822 = vadd.f32 %v1548, %v1821
    %1823 = vdwg.mxu0
    %vm1824 = vcmp.gt.f32.partialorder %v1746, 0.0
    %vm1825 = vcmp.gt.f32.partialorder %v1748, 0.0
    %vm1826 = vcmp.gt.f32.partialorder %v1750, 0.0
    %vm1827 = vcmp.gt.f32.partialorder %v1752, 0.0
    %vm1828 = vcmp.gt.f32.partialorder %v1756, 0.0
    %vm1829 = vcmp.gt.f32.partialorder %v1758, 0.0
    %vm1830 = vcmp.gt.f32.partialorder %v1760, 0.0
    %vm1831 = vcmp.gt.f32.partialorder %v1762, 0.0
    %vm1832 = vcmp.gt.f32.partialorder %v1766, 0.0
    %vm1833 = vcmp.gt.f32.partialorder %v1768, 0.0
    %vm1834 = vcmp.gt.f32.partialorder %v1770, 0.0
    %vm1835 = vcmp.gt.f32.partialorder %v1772, 0.0
    %vm1836 = vcmp.gt.f32.partialorder %v1776, 0.0
    %vm1837 = vcmp.gt.f32.partialorder %v1778, 0.0
    %vm1838 = vcmp.gt.f32.partialorder %v1780, 0.0
    %vm1839 = vcmp.gt.f32.partialorder %v1782, 0.0
    %vm1840 = vcmp.gt.f32.partialorder %v1786, 0.0
    %vm1841 = vcmp.gt.f32.partialorder %v1788, 0.0
    %vm1842 = vcmp.gt.f32.partialorder %v1790, 0.0
    %vm1843 = vcmp.gt.f32.partialorder %v1792, 0.0
    %vm1844 = vcmp.gt.f32.partialorder %v1796, 0.0
    %vm1845 = vcmp.gt.f32.partialorder %v1798, 0.0
    %vm1846 = vcmp.gt.f32.partialorder %v1800, 0.0
    %vm1847 = vcmp.gt.f32.partialorder %v1802, 0.0
    %vm1848 = vcmp.gt.f32.partialorder %v1806, 0.0
    %vm1849 = vcmp.gt.f32.partialorder %v1808, 0.0
    %vm1850 = vcmp.gt.f32.partialorder %v1810, 0.0
    %vm1851 = vcmp.gt.f32.partialorder %v1812, 0.0
    %vm1852 = vcmp.gt.f32.partialorder %v1816, 0.0
    %vm1853 = vcmp.gt.f32.partialorder %v1818, 0.0
    %vm1854 = vcmp.gt.f32.partialorder %v1820, 0.0
    %vm1855 = vcmp.gt.f32.partialorder %v1822, 0.0
    %v1856 = vmul.f32 %v1746, 1.442695
    %v1857 = vpow.pop %v1856
    %v1858 = vmul.f32 %v1748, 1.442695
    %v1859 = vpow.pop %v1858
    %v1860 = vmul.f32 %v1750, 1.442695
    %v1861 = vpow.pop %v1860
    %v1862 = vmul.f32 %v1752, 1.442695
    %v1863 = vpow.pop %v1862
    %v1864 = vmul.f32 %v1756, 1.442695
    %v1865 = vpow.pop %v1864
    %v1866 = vmul.f32 %v1758, 1.442695
    %v1867 = vpow.pop %v1866
    %v1868 = vmul.f32 %v1760, 1.442695
    %v1869 = vpow.pop %v1868
    %v1870 = vmul.f32 %v1762, 1.442695
    %v1871 = vpow.pop %v1870
    %v1872 = vmul.f32 %v1766, 1.442695
    %v1873 = vpow.pop %v1872
    %v1874 = vmul.f32 %v1768, 1.442695
    %v1875 = vpow.pop %v1874
    %v1876 = vmul.f32 %v1770, 1.442695
    %v1877 = vpow.pop %v1876
    %v1878 = vmul.f32 %v1772, 1.442695
    %v1879 = vpow.pop %v1878
    %v1880 = vmul.f32 %v1776, 1.442695
    %v1881 = vpow.pop %v1880
    %v1882 = vmul.f32 %v1778, 1.442695
    %v1883 = vpow.pop %v1882
    %v1884 = vmul.f32 %v1780, 1.442695
    %v1885 = vpow.pop %v1884
    %v1886 = vmul.f32 %v1782, 1.442695
    %v1887 = vpow.pop %v1886
    %v1888 = vmul.f32 %v1786, 1.442695
    %v1889 = vpow.pop %v1888
    %v1890 = vmul.f32 %v1788, 1.442695
    %v1891 = vpow.pop %v1890
    %v1892 = vmul.f32 %v1790, 1.442695
    %v1893 = vpow.pop %v1892
    %v1894 = vmul.f32 %v1792, 1.442695
    %v1895 = vpow.pop %v1894
    %v1896 = vmul.f32 %v1796, 1.442695
    %v1897 = vpow.pop %v1896
    %v1898 = vmul.f32 %v1798, 1.442695
    %v1899 = vpow.pop %v1898
    %v1900 = vmul.f32 %v1800, 1.442695
    %v1901 = vpow.pop %v1900
    %v1902 = vmul.f32 %v1802, 1.442695
    %v1903 = vpow.pop %v1902
    %v1904 = vmul.f32 %v1806, 1.442695
    %v1905 = vpow.pop %v1904
    %v1906 = vmul.f32 %v1808, 1.442695
    %v1907 = vpow.pop %v1906
    %v1908 = vmul.f32 %v1810, 1.442695
    %v1909 = vpow.pop %v1908
    %v1910 = vmul.f32 %v1812, 1.442695
    %v1911 = vpow.pop %v1910
    %v1912 = vmul.f32 %v1816, 1.442695
    %v1913 = vpow.pop %v1912
    %v1914 = vmul.f32 %v1818, 1.442695
    %v1915 = vpow.pop %v1914
    %v1916 = vmul.f32 %v1820, 1.442695
    %v1917 = vpow.pop %v1916
    %v1918 = vmul.f32 %v1822, 1.442695
    %v1919 = vpow.pop %v1918
    %v1920 = vsub.f32 %v1857, 1.0
    %v1921 = vsub.f32 %v1859, 1.0
    %v1922 = vsub.f32 %v1861, 1.0
    %v1923 = vsub.f32 %v1863, 1.0
    %v1924 = vsub.f32 %v1865, 1.0
    %v1925 = vsub.f32 %v1867, 1.0
    %v1926 = vsub.f32 %v1869, 1.0
    %v1927 = vsub.f32 %v1871, 1.0
    %v1928 = vsub.f32 %v1873, 1.0
    %v1929 = vsub.f32 %v1875, 1.0
    %v1930 = vsub.f32 %v1877, 1.0
    %v1931 = vsub.f32 %v1879, 1.0
    %v1932 = vsub.f32 %v1881, 1.0
    %v1933 = vsub.f32 %v1883, 1.0
    %v1934 = vsub.f32 %v1885, 1.0
    %v1935 = vsub.f32 %v1887, 1.0
    %v1936 = vsub.f32 %v1889, 1.0
    %v1937 = vsub.f32 %v1891, 1.0
    %v1938 = vsub.f32 %v1893, 1.0
    %v1939 = vsub.f32 %v1895, 1.0
    %v1940 = vsub.f32 %v1897, 1.0
    %v1941 = vsub.f32 %v1899, 1.0
    %v1942 = vsub.f32 %v1901, 1.0
    %v1943 = vsub.f32 %v1903, 1.0
    %v1944 = vsub.f32 %v1905, 1.0
    %v1945 = vsub.f32 %v1907, 1.0
    %v1946 = vsub.f32 %v1909, 1.0
    %v1947 = vsub.f32 %v1911, 1.0
    %v1948 = vsub.f32 %v1913, 1.0
    %v1949 = vsub.f32 %v1915, 1.0
    %v1950 = vsub.f32 %v1917, 1.0
    %v1951 = vsub.f32 %v1919, 1.0
    %v1952 = vsel %vm1824, %v1746, %v1920
    %v1953 = vsel %vm1825, %v1748, %v1921
    %v1954 = vsel %vm1826, %v1750, %v1922
    %v1955 = vsel %vm1827, %v1752, %v1923
    %v1956 = vsel %vm1828, %v1756, %v1924
    %v1957 = vsel %vm1829, %v1758, %v1925
    %v1958 = vsel %vm1830, %v1760, %v1926
    %v1959 = vsel %vm1831, %v1762, %v1927
    %v1960 = vsel %vm1832, %v1766, %v1928
    %v1961 = vsel %vm1833, %v1768, %v1929
    %v1962 = vsel %vm1834, %v1770, %v1930
    %v1963 = vsel %vm1835, %v1772, %v1931
    %v1964 = vsel %vm1836, %v1776, %v1932
    %v1965 = vsel %vm1837, %v1778, %v1933
    %v1966 = vsel %vm1838, %v1780, %v1934
    %v1967 = vsel %vm1839, %v1782, %v1935
    %v1968 = vsel %vm1840, %v1786, %v1936
    %v1969 = vsel %vm1841, %v1788, %v1937
    %v1970 = vsel %vm1842, %v1790, %v1938
    %v1971 = vsel %vm1843, %v1792, %v1939
    %v1972 = vsel %vm1844, %v1796, %v1940
    %v1973 = vsel %vm1845, %v1798, %v1941
    %v1974 = vsel %vm1846, %v1800, %v1942
    %v1975 = vsel %vm1847, %v1802, %v1943
    %v1976 = vsel %vm1848, %v1806, %v1944
    %v1977 = vsel %vm1849, %v1808, %v1945
    %v1978 = vsel %vm1850, %v1810, %v1946
    %v1979 = vsel %vm1851, %v1812, %v1947
    %v1980 = vsel %vm1852, %v1816, %v1948
    %v1981 = vsel %vm1853, %v1818, %v1949
    %v1982 = vsel %vm1854, %v1820, %v1950
    %v1983 = vsel %vm1855, %v1822, %v1951
    %v1984 = vld [vmem:[#allocation5] sm:$0xff]
    %v1985 = vld [vmem:[#allocation5 + $0x8] sm:$0xff]
    %v1986 = vld [vmem:[#allocation5 + $0x10] sm:$0xff]
    %v1987 = vld [vmem:[#allocation5 + $0x18] sm:$0xff]
    %v1988 = vld [vmem:[#allocation5 + $0x20] sm:$0xff]
    %v1989 = vld [vmem:[#allocation5 + $0x28] sm:$0xff]
    %v1990 = vld [vmem:[#allocation5 + $0x30] sm:$0xff]
    %v1991 = vld [vmem:[#allocation5 + $0x38] sm:$0xff]
    %v1992 = vld [vmem:[#allocation5 + $0x40] sm:$0xff]
    %v1993 = vld [vmem:[#allocation5 + $0x48] sm:$0xff]
    %v1994 = vld [vmem:[#allocation5 + $0x50] sm:$0xff]
    %v1995 = vld [vmem:[#allocation5 + $0x58] sm:$0xff]
    %v1996 = vld [vmem:[#allocation5 + $0x60] sm:$0xff]
    %v1997 = vld [vmem:[#allocation5 + $0x68] sm:$0xff]
    %v1998 = vld [vmem:[#allocation5 + $0x70] sm:$0xff]
    %v1999 = vld [vmem:[#allocation5 + $0x78] sm:$0xff]
    %v2000 = vld [vmem:[#allocation5 + $0x80] sm:$0xff]
    %v2001 = vld [vmem:[#allocation5 + $0x88] sm:$0xff]
    %v2002 = vld [vmem:[#allocation5 + $0x90] sm:$0xff]
    %v2003 = vld [vmem:[#allocation5 + $0x98] sm:$0xff]
    %v2004 = vld [vmem:[#allocation5 + $0xa0] sm:$0xff]
    %v2005 = vld [vmem:[#allocation5 + $0xa8] sm:$0xff]
    %v2006 = vld [vmem:[#allocation5 + $0xb0] sm:$0xff]
    %v2007 = vld [vmem:[#allocation5 + $0xb8] sm:$0xff]
    %v2008 = vld [vmem:[#allocation5 + $0xc0] sm:$0xff]
    %v2009 = vld [vmem:[#allocation5 + $0xc8] sm:$0xff]
    %v2010 = vld [vmem:[#allocation5 + $0xd0] sm:$0xff]
    %v2011 = vld [vmem:[#allocation5 + $0xd8] sm:$0xff]
    %v2012 = vld [vmem:[#allocation5 + $0xe0] sm:$0xff]
    %v2013 = vld [vmem:[#allocation5 + $0xe8] sm:$0xff]
    %v2014 = vld [vmem:[#allocation5 + $0xf0] sm:$0xff]
    %v2015 = vld [vmem:[#allocation5 + $0xf8] sm:$0xff]
    %v2016 = vpack.c.bf16 %v1954, %v1952
    %v2017 = vpack.c.bf16 %v1955, %v1953
    %v2018 = vpack.c.bf16 %v1958, %v1956
    %v2019 = vpack.c.bf16 %v1959, %v1957
    %v2020 = vpack.c.bf16 %v1962, %v1960
    %v2021 = vpack.c.bf16 %v1963, %v1961
    %v2022 = vpack.c.bf16 %v1966, %v1964
    %v2023 = vpack.c.bf16 %v1967, %v1965
    %v2024 = vpack.c.bf16 %v1970, %v1968
    %v2025 = vpack.c.bf16 %v1971, %v1969
    %v2026 = vpack.c.bf16 %v1974, %v1972
    %v2027 = vpack.c.bf16 %v1975, %v1973
    %v2028 = vpack.c.bf16 %v1978, %v1976
    %v2029 = vpack.c.bf16 %v1979, %v1977
    %v2030 = vpack.c.bf16 %v1982, %v1980
    %v2031 = vpack.c.bf16 %v1983, %v1981
    %v2032 = vld [vmem:[%s12] sm:$0x3]
    %v2034 = vlaneseq
    %v2035 = vshrl.u32 %v2034, 7
    %v2036 = vsub.s32 0, %v2035
    %v2037 = vrot.slane %v2032, %v2036
    %v2038 = vlaneseq
    %v2039 = vshrl.u32 %v2038, 7
    %v2040 = vsub.s32 1, %v2039
    %v2041 = vrot.slane %v2032, %v2040
    %v2076 = vunpack.c.l.b16 %v1984
    %v2077 = vunpack.c.h.b16 %v1984
    %v2078 = vunpack.c.l.b16 %v1985
    %v2079 = vunpack.c.h.b16 %v1985
    %v2080 = vunpack.c.l.b16 %v1986
    %v2081 = vunpack.c.h.b16 %v1986
    %v2082 = vunpack.c.l.b16 %v1987
    %v2083 = vunpack.c.h.b16 %v1987
    %v2084 = vunpack.c.l.b16 %v1988
    %v2085 = vunpack.c.h.b16 %v1988
    %v2086 = vunpack.c.l.b16 %v1989
    %v2087 = vunpack.c.h.b16 %v1989
    %v2088 = vunpack.c.l.b16 %v1990
    %v2089 = vunpack.c.h.b16 %v1990
    %v2090 = vunpack.c.l.b16 %v1991
    %v2091 = vunpack.c.h.b16 %v1991
    %v2092 = vunpack.c.l.b16 %v1992
    %v2093 = vunpack.c.h.b16 %v1992
    %v2094 = vunpack.c.l.b16 %v1993
    %v2095 = vunpack.c.h.b16 %v1993
    %v2096 = vunpack.c.l.b16 %v1994
    %v2097 = vunpack.c.h.b16 %v1994
    %v2098 = vunpack.c.l.b16 %v1995
    %v2099 = vunpack.c.h.b16 %v1995
    %v2100 = vunpack.c.l.b16 %v1996
    %v2101 = vunpack.c.h.b16 %v1996
    %v2102 = vunpack.c.l.b16 %v1997
    %v2103 = vunpack.c.h.b16 %v1997
    %v2104 = vunpack.c.l.b16 %v1998
    %v2105 = vunpack.c.h.b16 %v1998
    %v2106 = vunpack.c.l.b16 %v1999
    %v2107 = vunpack.c.h.b16 %v1999
    %v2108 = vunpack.c.l.b16 %v2000
    %v2109 = vunpack.c.h.b16 %v2000
    %v2110 = vunpack.c.l.b16 %v2001
    %v2111 = vunpack.c.h.b16 %v2001
    %v2112 = vunpack.c.l.b16 %v2002
    %v2113 = vunpack.c.h.b16 %v2002
    %v2114 = vunpack.c.l.b16 %v2003
    %v2115 = vunpack.c.h.b16 %v2003
    %v2116 = vunpack.c.l.b16 %v2004
    %v2117 = vunpack.c.h.b16 %v2004
    %v2118 = vunpack.c.l.b16 %v2005
    %v2119 = vunpack.c.h.b16 %v2005
    %v2120 = vunpack.c.l.b16 %v2006
    %v2121 = vunpack.c.h.b16 %v2006
    %v2122 = vunpack.c.l.b16 %v2007
    %v2123 = vunpack.c.h.b16 %v2007
    %v2124 = vunpack.c.l.b16 %v2008
    %v2125 = vunpack.c.h.b16 %v2008
    %v2126 = vunpack.c.l.b16 %v2009
    %v2127 = vunpack.c.h.b16 %v2009
    %v2128 = vunpack.c.l.b16 %v2010
    %v2129 = vunpack.c.h.b16 %v2010
    %v2130 = vunpack.c.l.b16 %v2011
    %v2131 = vunpack.c.h.b16 %v2011
    %v2132 = vunpack.c.l.b16 %v2012
    %v2133 = vunpack.c.h.b16 %v2012
    %v2134 = vunpack.c.l.b16 %v2013
    %v2135 = vunpack.c.h.b16 %v2013
    %v2136 = vunpack.c.l.b16 %v2014
    %v2137 = vunpack.c.h.b16 %v2014
    %v2138 = vunpack.c.l.b16 %v2015
    %v2139 = vunpack.c.h.b16 %v2015
    %v2140 = vpack.c.b16 %v2078, %v2076
    %v2141 = vpack.c.b16 %v2079, %v2077
    %v2142 = vpack.c.b16 %v2082, %v2080
    %v2143 = vpack.c.b16 %v2083, %v2081
    %v2144 = vpack.c.b16 %v2086, %v2084
    %v2145 = vpack.c.b16 %v2087, %v2085
    %v2146 = vpack.c.b16 %v2090, %v2088
    %v2147 = vpack.c.b16 %v2091, %v2089
    %v2148 = vpack.c.b16 %v2094, %v2092
    %v2149 = vpack.c.b16 %v2095, %v2093
    %v2150 = vpack.c.b16 %v2098, %v2096
    %v2151 = vpack.c.b16 %v2099, %v2097
    %v2152 = vpack.c.b16 %v2102, %v2100
    %v2153 = vpack.c.b16 %v2103, %v2101
    %v2154 = vpack.c.b16 %v2106, %v2104
    %v2155 = vpack.c.b16 %v2107, %v2105
    %v2156 = vpack.c.b16 %v2110, %v2108
    %v2157 = vpack.c.b16 %v2111, %v2109
    %v2158 = vpack.c.b16 %v2114, %v2112
    %v2159 = vpack.c.b16 %v2115, %v2113
    %v2160 = vpack.c.b16 %v2118, %v2116
    %v2161 = vpack.c.b16 %v2119, %v2117
    %v2162 = vpack.c.b16 %v2122, %v2120
    %v2163 = vpack.c.b16 %v2123, %v2121
    %v2164 = vpack.c.b16 %v2126, %v2124
    %v2165 = vpack.c.b16 %v2127, %v2125
    %v2166 = vpack.c.b16 %v2130, %v2128
    %v2167 = vpack.c.b16 %v2131, %v2129
    %v2168 = vpack.c.b16 %v2134, %v2132
    %v2169 = vpack.c.b16 %v2135, %v2133
    %v2170 = vpack.c.b16 %v2138, %v2136
    %v2171 = vpack.c.b16 %v2139, %v2137
    %2204 = vmatprep.subr.bf16.mxu0 %v2141
    %2205 = vmatpush1.bf16.msra.mxu0 %v2140
    %2206 = vmatprep.subr.bf16.mxu0 %v2143
    %2207 = vmatpush1.bf16.msra.mxu0 %v2142
    %2208 = vmatprep.subr.bf16.mxu0 %v2145
    %2209 = vmatpush1.bf16.msra.mxu0 %v2144
    %2210 = vmatprep.subr.bf16.mxu0 %v2147
    %2211 = vmatpush1.bf16.msra.mxu0 %v2146
    %2212 = vmatprep.subr.bf16.mxu0 %v2149
    %2213 = vmatpush1.bf16.msra.mxu0 %v2148
    %2214 = vmatprep.subr.bf16.mxu0 %v2151
    %2215 = vmatpush1.bf16.msra.mxu0 %v2150
    %2216 = vmatprep.subr.bf16.mxu0 %v2153
    %2217 = vmatpush1.bf16.msra.mxu0 %v2152
    %2218 = vmatprep.subr.bf16.mxu0 %v2155
    %2219 = vmatpush1.bf16.msra.mxu0 %v2154
    %2220 = vmatprep.subr.bf16.mxu0 %v2157
    %2221 = vmatpush1.bf16.msra.mxu0 %v2156
    %2222 = vmatprep.subr.bf16.mxu0 %v2159
    %2223 = vmatpush1.bf16.msra.mxu0 %v2158
    %2224 = vmatprep.subr.bf16.mxu0 %v2161
    %2225 = vmatpush1.bf16.msra.mxu0 %v2160
    %2226 = vmatprep.subr.bf16.mxu0 %v2163
    %2227 = vmatpush1.bf16.msra.mxu0 %v2162
    %2228 = vmatprep.subr.bf16.mxu0 %v2165
    %2229 = vmatpush1.bf16.msra.mxu0 %v2164
    %2230 = vmatprep.subr.bf16.mxu0 %v2167
    %2231 = vmatpush1.bf16.msra.mxu0 %v2166
    %2232 = vmatprep.subr.bf16.mxu0 %v2169
    %2233 = vmatpush1.bf16.msra.mxu0 %v2168
    %2234 = vmatprep.subr.bf16.mxu0 %v2171
    %2235 = vmatpush1.bf16.msra.mxu0 %v2170
    %2236 = vmatprep.mubr.bf16.mxu0 %v2017
    %2237 = vmatmul.mubr.bf16.gmra.mrb[0].mxu0 %v2016
    %v2238 = vpop.f32.mrb[0].mxu0
    %v2239 = vadd.f32 %v2037, %v2238
    %v2240 = vpop.f32.mrb[0].mxu0
    %v2241 = vadd.f32 %v2041, %v2240
    %v2242 = vpop.f32.mrb[0].mxu0
    %v2243 = vadd.f32 %v2037, %v2242
    %v2244 = vpop.f32.mrb[0].mxu0
    %v2245 = vadd.f32 %v2041, %v2244
    %2246 = vmatprep.mubr.bf16.mxu0 %v2019
    %2247 = vmatmul.mubr.bf16.gmra.mrb[0].mxu0 %v2018
    %v2248 = vpop.f32.mrb[0].mxu0
    %v2249 = vadd.f32 %v2037, %v2248
    %v2250 = vpop.f32.mrb[0].mxu0
    %v2251 = vadd.f32 %v2041, %v2250
    %v2252 = vpop.f32.mrb[0].mxu0
    %v2253 = vadd.f32 %v2037, %v2252
    %v2254 = vpop.f32.mrb[0].mxu0
    %v2255 = vadd.f32 %v2041, %v2254
    %2256 = vmatprep.mubr.bf16.mxu0 %v2021
    %2257 = vmatmul.mubr.bf16.gmra.mrb[0].mxu0 %v2020
    %v2258 = vpop.f32.mrb[0].mxu0
    %v2259 = vadd.f32 %v2037, %v2258
    %v2260 = vpop.f32.mrb[0].mxu0
    %v2261 = vadd.f32 %v2041, %v2260
    %v2262 = vpop.f32.mrb[0].mxu0
    %v2263 = vadd.f32 %v2037, %v2262
    %v2264 = vpop.f32.mrb[0].mxu0
    %v2265 = vadd.f32 %v2041, %v2264
    %2266 = vmatprep.mubr.bf16.mxu0 %v2023
    %2267 = vmatmul.mubr.bf16.gmra.mrb[0].mxu0 %v2022
    %v2268 = vpop.f32.mrb[0].mxu0
    %v2269 = vadd.f32 %v2037, %v2268
    %v2270 = vpop.f32.mrb[0].mxu0
    %v2271 = vadd.f32 %v2041, %v2270
    %v2272 = vpop.f32.mrb[0].mxu0
    %v2273 = vadd.f32 %v2037, %v2272
    %v2274 = vpop.f32.mrb[0].mxu0
    %v2275 = vadd.f32 %v2041, %v2274
    %2276 = vmatprep.mubr.bf16.mxu0 %v2025
    %2277 = vmatmul.mubr.bf16.gmra.mrb[0].mxu0 %v2024
    %v2278 = vpop.f32.mrb[0].mxu0
    %v2279 = vadd.f32 %v2037, %v2278
    %v2280 = vpop.f32.mrb[0].mxu0
    %v2281 = vadd.f32 %v2041, %v2280
    %v2282 = vpop.f32.mrb[0].mxu0
    %v2283 = vadd.f32 %v2037, %v2282
    %v2284 = vpop.f32.mrb[0].mxu0
    %v2285 = vadd.f32 %v2041, %v2284
    %2286 = vmatprep.mubr.bf16.mxu0 %v2027
    %2287 = vmatmul.mubr.bf16.gmra.mrb[0].mxu0 %v2026
    %v2288 = vpop.f32.mrb[0].mxu0
    %v2289 = vadd.f32 %v2037, %v2288
    %v2290 = vpop.f32.mrb[0].mxu0
    %v2291 = vadd.f32 %v2041, %v2290
    %v2292 = vpop.f32.mrb[0].mxu0
    %v2293 = vadd.f32 %v2037, %v2292
    %v2294 = vpop.f32.mrb[0].mxu0
    %v2295 = vadd.f32 %v2041, %v2294
    %2296 = vmatprep.mubr.bf16.mxu0 %v2029
    %2297 = vmatmul.mubr.bf16.gmra.mrb[0].mxu0 %v2028
    %v2298 = vpop.f32.mrb[0].mxu0
    %v2299 = vadd.f32 %v2037, %v2298
    %v2300 = vpop.f32.mrb[0].mxu0
    %v2301 = vadd.f32 %v2041, %v2300
    %v2302 = vpop.f32.mrb[0].mxu0
    %v2303 = vadd.f32 %v2037, %v2302
    %v2304 = vpop.f32.mrb[0].mxu0
    %v2305 = vadd.f32 %v2041, %v2304
    %2306 = vmatprep.mubr.bf16.mxu0 %v2031
    %2307 = vmatmul.mubr.bf16.gmra.mrb[0].mxu0 %v2030
    %v2308 = vpop.f32.mrb[0].mxu0
    %v2309 = vadd.f32 %v2037, %v2308
    %v2310 = vpop.f32.mrb[0].mxu0
    %v2311 = vadd.f32 %v2041, %v2310
    %v2312 = vpop.f32.mrb[0].mxu0
    %v2313 = vadd.f32 %v2037, %v2312
    %v2314 = vpop.f32.mrb[0].mxu0
    %v2315 = vadd.f32 %v2041, %v2314
    %2316 = vdwg.mxu0
    %vm2317 = vcmp.gt.f32.partialorder %v2239, 0.0
    %vm2318 = vcmp.gt.f32.partialorder %v2241, 0.0
    %vm2319 = vcmp.gt.f32.partialorder %v2243, 0.0
    %vm2320 = vcmp.gt.f32.partialorder %v2245, 0.0
    %vm2321 = vcmp.gt.f32.partialorder %v2249, 0.0
    %vm2322 = vcmp.gt.f32.partialorder %v2251, 0.0
    %vm2323 = vcmp.gt.f32.partialorder %v2253, 0.0
    %vm2324 = vcmp.gt.f32.partialorder %v2255, 0.0
    %vm2325 = vcmp.gt.f32.partialorder %v2259, 0.0
    %vm2326 = vcmp.gt.f32.partialorder %v2261, 0.0
    %vm2327 = vcmp.gt.f32.partialorder %v2263, 0.0
    %vm2328 = vcmp.gt.f32.partialorder %v2265, 0.0
    %vm2329 = vcmp.gt.f32.partialorder %v2269, 0.0
    %vm2330 = vcmp.gt.f32.partialorder %v2271, 0.0
    %vm2331 = vcmp.gt.f32.partialorder %v2273, 0.0
    %vm2332 = vcmp.gt.f32.partialorder %v2275, 0.0
    %vm2333 = vcmp.gt.f32.partialorder %v2279, 0.0
    %vm2334 = vcmp.gt.f32.partialorder %v2281, 0.0
    %vm2335 = vcmp.gt.f32.partialorder %v2283, 0.0
    %vm2336 = vcmp.gt.f32.partialorder %v2285, 0.0
    %vm2337 = vcmp.gt.f32.partialorder %v2289, 0.0
    %vm2338 = vcmp.gt.f32.partialorder %v2291, 0.0
    %vm2339 = vcmp.gt.f32.partialorder %v2293, 0.0
    %vm2340 = vcmp.gt.f32.partialorder %v2295, 0.0
    %vm2341 = vcmp.gt.f32.partialorder %v2299, 0.0
    %vm2342 = vcmp.gt.f32.partialorder %v2301, 0.0
    %vm2343 = vcmp.gt.f32.partialorder %v2303, 0.0
    %vm2344 = vcmp.gt.f32.partialorder %v2305, 0.0
    %vm2345 = vcmp.gt.f32.partialorder %v2309, 0.0
    %vm2346 = vcmp.gt.f32.partialorder %v2311, 0.0
    %vm2347 = vcmp.gt.f32.partialorder %v2313, 0.0
    %vm2348 = vcmp.gt.f32.partialorder %v2315, 0.0
    %v2349 = vmul.f32 %v2239, 1.442695
    %v2350 = vpow.pop %v2349
    %v2351 = vmul.f32 %v2241, 1.442695
    %v2352 = vpow.pop %v2351
    %v2353 = vmul.f32 %v2243, 1.442695
    %v2354 = vpow.pop %v2353
    %v2355 = vmul.f32 %v2245, 1.442695
    %v2356 = vpow.pop %v2355
    %v2357 = vmul.f32 %v2249, 1.442695
    %v2358 = vpow.pop %v2357
    %v2359 = vmul.f32 %v2251, 1.442695
    %v2360 = vpow.pop %v2359
    %v2361 = vmul.f32 %v2253, 1.442695
    %v2362 = vpow.pop %v2361
    %v2363 = vmul.f32 %v2255, 1.442695
    %v2364 = vpow.pop %v2363
    %v2365 = vmul.f32 %v2259, 1.442695
    %v2366 = vpow.pop %v2365
    %v2367 = vmul.f32 %v2261, 1.442695
    %v2368 = vpow.pop %v2367
    %v2369 = vmul.f32 %v2263, 1.442695
    %v2370 = vpow.pop %v2369
    %v2371 = vmul.f32 %v2265, 1.442695
    %v2372 = vpow.pop %v2371
    %v2373 = vmul.f32 %v2269, 1.442695
    %v2374 = vpow.pop %v2373
    %v2375 = vmul.f32 %v2271, 1.442695
    %v2376 = vpow.pop %v2375
    %v2377 = vmul.f32 %v2273, 1.442695
    %v2378 = vpow.pop %v2377
    %v2379 = vmul.f32 %v2275, 1.442695
    %v2380 = vpow.pop %v2379
    %v2381 = vmul.f32 %v2279, 1.442695
    %v2382 = vpow.pop %v2381
    %v2383 = vmul.f32 %v2281, 1.442695
    %v2384 = vpow.pop %v2383
    %v2385 = vmul.f32 %v2283, 1.442695
    %v2386 = vpow.pop %v2385
    %v2387 = vmul.f32 %v2285, 1.442695
    %v2388 = vpow.pop %v2387
    %v2389 = vmul.f32 %v2289, 1.442695
    %v2390 = vpow.pop %v2389
    %v2391 = vmul.f32 %v2291, 1.442695
    %v2392 = vpow.pop %v2391
    %v2393 = vmul.f32 %v2293, 1.442695
    %v2394 = vpow.pop %v2393
    %v2395 = vmul.f32 %v2295, 1.442695
    %v2396 = vpow.pop %v2395
    %v2397 = vmul.f32 %v2299, 1.442695
    %v2398 = vpow.pop %v2397
    %v2399 = vmul.f32 %v2301, 1.442695
    %v2400 = vpow.pop %v2399
    %v2401 = vmul.f32 %v2303, 1.442695
    %v2402 = vpow.pop %v2401
    %v2403 = vmul.f32 %v2305, 1.442695
    %v2404 = vpow.pop %v2403
    %v2405 = vmul.f32 %v2309, 1.442695
    %v2406 = vpow.pop %v2405
    %v2407 = vmul.f32 %v2311, 1.442695
    %v2408 = vpow.pop %v2407
    %v2409 = vmul.f32 %v2313, 1.442695
    %v2410 = vpow.pop %v2409
    %v2411 = vmul.f32 %v2315, 1.442695
    %v2412 = vpow.pop %v2411
    %v2413 = vsub.f32 %v2350, 1.0
    %v2414 = vsub.f32 %v2352, 1.0
    %v2415 = vsub.f32 %v2354, 1.0
    %v2416 = vsub.f32 %v2356, 1.0
    %v2417 = vsub.f32 %v2358, 1.0
    %v2418 = vsub.f32 %v2360, 1.0
    %v2419 = vsub.f32 %v2362, 1.0
    %v2420 = vsub.f32 %v2364, 1.0
    %v2421 = vsub.f32 %v2366, 1.0
    %v2422 = vsub.f32 %v2368, 1.0
    %v2423 = vsub.f32 %v2370, 1.0
    %v2424 = vsub.f32 %v2372, 1.0
    %v2425 = vsub.f32 %v2374, 1.0
    %v2426 = vsub.f32 %v2376, 1.0
    %v2427 = vsub.f32 %v2378, 1.0
    %v2428 = vsub.f32 %v2380, 1.0
    %v2429 = vsub.f32 %v2382, 1.0
    %v2430 = vsub.f32 %v2384, 1.0
    %v2431 = vsub.f32 %v2386, 1.0
    %v2432 = vsub.f32 %v2388, 1.0
    %v2433 = vsub.f32 %v2390, 1.0
    %v2434 = vsub.f32 %v2392, 1.0
    %v2435 = vsub.f32 %v2394, 1.0
    %v2436 = vsub.f32 %v2396, 1.0
    %v2437 = vsub.f32 %v2398, 1.0
    %v2438 = vsub.f32 %v2400, 1.0
    %v2439 = vsub.f32 %v2402, 1.0
    %v2440 = vsub.f32 %v2404, 1.0
    %v2441 = vsub.f32 %v2406, 1.0
    %v2442 = vsub.f32 %v2408, 1.0
    %v2443 = vsub.f32 %v2410, 1.0
    %v2444 = vsub.f32 %v2412, 1.0
    %v2445 = vsel %vm2317, %v2239, %v2413
    %v2446 = vsel %vm2318, %v2241, %v2414
    %v2447 = vsel %vm2319, %v2243, %v2415
    %v2448 = vsel %vm2320, %v2245, %v2416
    %v2449 = vsel %vm2321, %v2249, %v2417
    %v2450 = vsel %vm2322, %v2251, %v2418
    %v2451 = vsel %vm2323, %v2253, %v2419
    %v2452 = vsel %vm2324, %v2255, %v2420
    %v2453 = vsel %vm2325, %v2259, %v2421
    %v2454 = vsel %vm2326, %v2261, %v2422
    %v2455 = vsel %vm2327, %v2263, %v2423
    %v2456 = vsel %vm2328, %v2265, %v2424
    %v2457 = vsel %vm2329, %v2269, %v2425
    %v2458 = vsel %vm2330, %v2271, %v2426
    %v2459 = vsel %vm2331, %v2273, %v2427
    %v2460 = vsel %vm2332, %v2275, %v2428
    %v2461 = vsel %vm2333, %v2279, %v2429
    %v2462 = vsel %vm2334, %v2281, %v2430
    %v2463 = vsel %vm2335, %v2283, %v2431
    %v2464 = vsel %vm2336, %v2285, %v2432
    %v2465 = vsel %vm2337, %v2289, %v2433
    %v2466 = vsel %vm2338, %v2291, %v2434
    %v2467 = vsel %vm2339, %v2293, %v2435
    %v2468 = vsel %vm2340, %v2295, %v2436
    %v2469 = vsel %vm2341, %v2299, %v2437
    %v2470 = vsel %vm2342, %v2301, %v2438
    %v2471 = vsel %vm2343, %v2303, %v2439
    %v2472 = vsel %vm2344, %v2305, %v2440
    %v2473 = vsel %vm2345, %v2309, %v2441
    %v2474 = vsel %vm2346, %v2311, %v2442
    %v2475 = vsel %vm2347, %v2313, %v2443
    %v2476 = vsel %vm2348, %v2315, %v2444
    %v2477 = vld [vmem:[#allocation7] sm:$0xf]
    %v2478 = vld [vmem:[#allocation7 + $0x4] sm:$0xf]
    %v2479 = vld [vmem:[#allocation7 + $0x8] sm:$0xf]
    %v2480 = vld [vmem:[#allocation7 + $0xc] sm:$0xf]
    %v2481 = vld [vmem:[#allocation7 + $0x10] sm:$0xf]
    %v2482 = vld [vmem:[#allocation7 + $0x14] sm:$0xf]
    %v2483 = vld [vmem:[#allocation7 + $0x18] sm:$0xf]
    %v2484 = vld [vmem:[#allocation7 + $0x1c] sm:$0xf]
    %v2485 = vld [vmem:[#allocation7 + $0x20] sm:$0xf]
    %v2486 = vld [vmem:[#allocation7 + $0x24] sm:$0xf]
    %v2487 = vld [vmem:[#allocation7 + $0x28] sm:$0xf]
    %v2488 = vld [vmem:[#allocation7 + $0x2c] sm:$0xf]
    %v2489 = vld [vmem:[#allocation7 + $0x30] sm:$0xf]
    %v2490 = vld [vmem:[#allocation7 + $0x34] sm:$0xf]
    %v2491 = vld [vmem:[#allocation7 + $0x38] sm:$0xf]
    %v2492 = vld [vmem:[#allocation7 + $0x3c] sm:$0xf]
    %v2493 = vld [vmem:[#allocation7 + $0x40] sm:$0xf]
    %v2494 = vld [vmem:[#allocation7 + $0x44] sm:$0xf]
    %v2495 = vld [vmem:[#allocation7 + $0x48] sm:$0xf]
    %v2496 = vld [vmem:[#allocation7 + $0x4c] sm:$0xf]
    %v2497 = vld [vmem:[#allocation7 + $0x50] sm:$0xf]
    %v2498 = vld [vmem:[#allocation7 + $0x54] sm:$0xf]
    %v2499 = vld [vmem:[#allocation7 + $0x58] sm:$0xf]
    %v2500 = vld [vmem:[#allocation7 + $0x5c] sm:$0xf]
    %v2501 = vld [vmem:[#allocation7 + $0x60] sm:$0xf]
    %v2502 = vld [vmem:[#allocation7 + $0x64] sm:$0xf]
    %v2503 = vld [vmem:[#allocation7 + $0x68] sm:$0xf]
    %v2504 = vld [vmem:[#allocation7 + $0x6c] sm:$0xf]
    %v2505 = vld [vmem:[#allocation7 + $0x70] sm:$0xf]
    %v2506 = vld [vmem:[#allocation7 + $0x74] sm:$0xf]
    %v2507 = vld [vmem:[#allocation7 + $0x78] sm:$0xf]
    %v2508 = vld [vmem:[#allocation7 + $0x7c] sm:$0xf]
    %v2509 = vpack.c.bf16 %v2447, %v2445
    %v2510 = vpack.c.bf16 %v2448, %v2446
    %v2511 = vpack.c.bf16 %v2451, %v2449
    %v2512 = vpack.c.bf16 %v2452, %v2450
    %v2513 = vpack.c.bf16 %v2455, %v2453
    %v2514 = vpack.c.bf16 %v2456, %v2454
    %v2515 = vpack.c.bf16 %v2459, %v2457
    %v2516 = vpack.c.bf16 %v2460, %v2458
    %v2517 = vpack.c.bf16 %v2463, %v2461
    %v2518 = vpack.c.bf16 %v2464, %v2462
    %v2519 = vpack.c.bf16 %v2467, %v2465
    %v2520 = vpack.c.bf16 %v2468, %v2466
    %v2521 = vpack.c.bf16 %v2471, %v2469
    %v2522 = vpack.c.bf16 %v2472, %v2470
    %v2523 = vpack.c.bf16 %v2475, %v2473
    %v2524 = vpack.c.bf16 %v2476, %v2474
    %v2525 = vld [vmem:[%s14] sm:$0x1]
    %v2527 = vlaneseq
    %v2528 = vshrl.u32 %v2527, 7
    %v2529 = vsub.s32 0, %v2528
    %v2530 = vrot.slane %v2525, %v2529
    %v2564 = vunpack.c.l.b16 %v2477
    %v2565 = vunpack.c.l.b16 %v2478
    %v2566 = vunpack.c.l.b16 %v2479
    %v2567 = vunpack.c.l.b16 %v2480
    %v2568 = vunpack.c.l.b16 %v2481
    %v2569 = vunpack.c.l.b16 %v2482
    %v2570 = vunpack.c.l.b16 %v2483
    %v2571 = vunpack.c.l.b16 %v2484
    %v2572 = vunpack.c.l.b16 %v2485
    %v2573 = vunpack.c.l.b16 %v2486
    %v2574 = vunpack.c.l.b16 %v2487
    %v2575 = vunpack.c.l.b16 %v2488
    %v2576 = vunpack.c.l.b16 %v2489
    %v2577 = vunpack.c.l.b16 %v2490
    %v2578 = vunpack.c.l.b16 %v2491
    %v2579 = vunpack.c.l.b16 %v2492
    %v2580 = vunpack.c.l.b16 %v2493
    %v2581 = vunpack.c.l.b16 %v2494
    %v2582 = vunpack.c.l.b16 %v2495
    %v2583 = vunpack.c.l.b16 %v2496
    %v2584 = vunpack.c.l.b16 %v2497
    %v2585 = vunpack.c.l.b16 %v2498
    %v2586 = vunpack.c.l.b16 %v2499
    %v2587 = vunpack.c.l.b16 %v2500
    %v2588 = vunpack.c.l.b16 %v2501
    %v2589 = vunpack.c.l.b16 %v2502
    %v2590 = vunpack.c.l.b16 %v2503
    %v2591 = vunpack.c.l.b16 %v2504
    %v2592 = vunpack.c.l.b16 %v2505
    %v2593 = vunpack.c.l.b16 %v2506
    %v2594 = vunpack.c.l.b16 %v2507
    %v2595 = vunpack.c.l.b16 %v2508
    %v2596 = vpack.c.b16 %v2565, %v2564
    %v2597 = vpack.c.b16 %v2567, %v2566
    %v2598 = vpack.c.b16 %v2569, %v2568
    %v2599 = vpack.c.b16 %v2571, %v2570
    %v2600 = vpack.c.b16 %v2573, %v2572
    %v2601 = vpack.c.b16 %v2575, %v2574
    %v2602 = vpack.c.b16 %v2577, %v2576
    %v2603 = vpack.c.b16 %v2579, %v2578
    %v2604 = vpack.c.b16 %v2581, %v2580
    %v2605 = vpack.c.b16 %v2583, %v2582
    %v2606 = vpack.c.b16 %v2585, %v2584
    %v2607 = vpack.c.b16 %v2587, %v2586
    %v2608 = vpack.c.b16 %v2589, %v2588
    %v2609 = vpack.c.b16 %v2591, %v2590
    %v2610 = vpack.c.b16 %v2593, %v2592
    %v2611 = vpack.c.b16 %v2595, %v2594
    %2628 = vmatprep.subr.bf16.mxu0 0
    %2629 = vmatpush1.bf16.msra.mxu0 %v2596
    %2630 = vmatprep.subr.bf16.mxu0 0
    %2631 = vmatpush1.bf16.msra.mxu0 %v2597
    %2632 = vmatprep.subr.bf16.mxu0 0
    %2633 = vmatpush1.bf16.msra.mxu0 %v2598
    %2634 = vmatprep.subr.bf16.mxu0 0
    %2635 = vmatpush1.bf16.msra.mxu0 %v2599
    %2636 = vmatprep.subr.bf16.mxu0 0
    %2637 = vmatpush1.bf16.msra.mxu0 %v2600
    %2638 = vmatprep.subr.bf16.mxu0 0
    %2639 = vmatpush1.bf16.msra.mxu0 %v2601
    %2640 = vmatprep.subr.bf16.mxu0 0
    %2641 = vmatpush1.bf16.msra.mxu0 %v2602
    %2642 = vmatprep.subr.bf16.mxu0 0
    %2643 = vmatpush1.bf16.msra.mxu0 %v2603
    %2644 = vmatprep.subr.bf16.mxu0 0
    %2645 = vmatpush1.bf16.msra.mxu0 %v2604
    %2646 = vmatprep.subr.bf16.mxu0 0
    %2647 = vmatpush1.bf16.msra.mxu0 %v2605
    %2648 = vmatprep.subr.bf16.mxu0 0
    %2649 = vmatpush1.bf16.msra.mxu0 %v2606
    %2650 = vmatprep.subr.bf16.mxu0 0
    %2651 = vmatpush1.bf16.msra.mxu0 %v2607
    %2652 = vmatprep.subr.bf16.mxu0 0
    %2653 = vmatpush1.bf16.msra.mxu0 %v2608
    %2654 = vmatprep.subr.bf16.mxu0 0
    %2655 = vmatpush1.bf16.msra.mxu0 %v2609
    %2656 = vmatprep.subr.bf16.mxu0 0
    %2657 = vmatpush1.bf16.msra.mxu0 %v2610
    %2658 = vmatprep.subr.bf16.mxu0 0
    %2659 = vmatpush1.bf16.msra.mxu0 %v2611
    %2660 = vmatprep.mubr.bf16.mxu0 %v2510
    %2661 = vmatmul.mubr.bf16.gmra.mrb[0].mxu0 %v2509
    %v2662 = vpop.f32.mrb[0].mxu0
    %v2663 = vadd.f32 %v2530, %v2662
    %v2664 = vpop.f32.mrb[0].mxu0
    %v2665 = vpop.f32.mrb[0].mxu0
    %v2666 = vadd.f32 %v2530, %v2665
    %v2667 = vpop.f32.mrb[0].mxu0
    %2668 = vmatprep.mubr.bf16.mxu0 %v2512
    %2669 = vmatmul.mubr.bf16.gmra.mrb[0].mxu0 %v2511
    %v2670 = vpop.f32.mrb[0].mxu0
    %v2671 = vadd.f32 %v2530, %v2670
    %v2672 = vpop.f32.mrb[0].mxu0
    %v2673 = vpop.f32.mrb[0].mxu0
    %v2674 = vadd.f32 %v2530, %v2673
    %v2675 = vpop.f32.mrb[0].mxu0
    %2676 = vmatprep.mubr.bf16.mxu0 %v2514
    %2677 = vmatmul.mubr.bf16.gmra.mrb[0].mxu0 %v2513
    %v2678 = vpop.f32.mrb[0].mxu0
    %v2679 = vadd.f32 %v2530, %v2678
    %v2680 = vpop.f32.mrb[0].mxu0
    %v2681 = vpop.f32.mrb[0].mxu0
    %v2682 = vadd.f32 %v2530, %v2681
    %v2683 = vpop.f32.mrb[0].mxu0
    %2684 = vmatprep.mubr.bf16.mxu0 %v2516
    %2685 = vmatmul.mubr.bf16.gmra.mrb[0].mxu0 %v2515
    %v2686 = vpop.f32.mrb[0].mxu0
    %v2687 = vadd.f32 %v2530, %v2686
    %v2688 = vpop.f32.mrb[0].mxu0
    %v2689 = vpop.f32.mrb[0].mxu0
    %v2690 = vadd.f32 %v2530, %v2689
    %v2691 = vpop.f32.mrb[0].mxu0
    %2692 = vmatprep.mubr.bf16.mxu0 %v2518
    %2693 = vmatmul.mubr.bf16.gmra.mrb[0].mxu0 %v2517
    %v2694 = vpop.f32.mrb[0].mxu0
    %v2695 = vadd.f32 %v2530, %v2694
    %v2696 = vpop.f32.mrb[0].mxu0
    %v2697 = vpop.f32.mrb[0].mxu0
    %v2698 = vadd.f32 %v2530, %v2697
    %v2699 = vpop.f32.mrb[0].mxu0
    %2700 = vmatprep.mubr.bf16.mxu0 %v2520
    %2701 = vmatmul.mubr.bf16.gmra.mrb[0].mxu0 %v2519
    %v2702 = vpop.f32.mrb[0].mxu0
    %v2703 = vadd.f32 %v2530, %v2702
    %v2704 = vpop.f32.mrb[0].mxu0
    %v2705 = vpop.f32.mrb[0].mxu0
    %v2706 = vadd.f32 %v2530, %v2705
    %v2707 = vpop.f32.mrb[0].mxu0
    %2708 = vmatprep.mubr.bf16.mxu0 %v2522
    %2709 = vmatmul.mubr.bf16.gmra.mrb[0].mxu0 %v2521
    %v2710 = vpop.f32.mrb[0].mxu0
    %v2711 = vadd.f32 %v2530, %v2710
    %v2712 = vpop.f32.mrb[0].mxu0
    %v2713 = vpop.f32.mrb[0].mxu0
    %v2714 = vadd.f32 %v2530, %v2713
    %v2715 = vpop.f32.mrb[0].mxu0
    %2716 = vmatprep.mubr.bf16.mxu0 %v2524
    %2717 = vmatmul.mubr.bf16.gmra.mrb[0].mxu0 %v2523
    %v2718 = vpop.f32.mrb[0].mxu0
    %v2719 = vadd.f32 %v2530, %v2718
    %v2720 = vpop.f32.mrb[0].mxu0
    %v2721 = vpop.f32.mrb[0].mxu0
    %v2722 = vadd.f32 %v2530, %v2721
    %v2723 = vpop.f32.mrb[0].mxu0
    %2724 = vdwg.mxu0
    %2725 = vst [vmem:[#allocation8] sm:$0xff] %v2663
    %2726 = vst [vmem:[#allocation8 + $0x8] sm:$0xff] %v2666
    %2727 = vst [vmem:[#allocation8 + $0x10] sm:$0xff] %v2671
    %2728 = vst [vmem:[#allocation8 + $0x18] sm:$0xff] %v2674
    %2729 = vst [vmem:[#allocation8 + $0x20] sm:$0xff] %v2679
    %2730 = vst [vmem:[#allocation8 + $0x28] sm:$0xff] %v2682
    %2731 = vst [vmem:[#allocation8 + $0x30] sm:$0xff] %v2687
    %2732 = vst [vmem:[#allocation8 + $0x38] sm:$0xff] %v2690
    %2733 = vst [vmem:[#allocation8 + $0x40] sm:$0xff] %v2695
    %2734 = vst [vmem:[#allocation8 + $0x48] sm:$0xff] %v2698
    %2735 = vst [vmem:[#allocation8 + $0x50] sm:$0xff] %v2703
    %2736 = vst [vmem:[#allocation8 + $0x58] sm:$0xff] %v2706
    %2737 = vst [vmem:[#allocation8 + $0x60] sm:$0xff] %v2711
    %2738 = vst [vmem:[#allocation8 + $0x68] sm:$0xff] %v2714
    %2739 = vst [vmem:[#allocation8 + $0x70] sm:$0xff] %v2719
    %2740 = vst [vmem:[#allocation8 + $0x78] sm:$0xff] %v2722
    // Predicated region
    $region74: #{tpu_custom_call.1} parent=1 // pred_check
      _
    $region75: #{tpu_custom_call.1} parent=1 // pred_check_branch
      %2742 = sbr.rel (0) target = $region77
    $region76: #{tpu_custom_call.1} parent=1 // pred_region
      %s2744 = ssub.s32 2048, 32
      %2745 = vsyncadd [#allocation4], %s2744
      %s2746 = sshll.u32 [#allocation8], 4
      %s2747 = int_to_ptr.vmem [resolvable:$true] %s2746
      %2752 = dma.vmem_to_hbm [thread:$0]  %s2747, 32, %s15, [#allocation4], 32, 32, 2
    $region77: #{tpu_custom_call.1} parent=1 // pred_fallthru
      _
    // Predicated region
    $region78: #{tpu_custom_call.1} parent=1 // pred_check
      _
    $region79: #{tpu_custom_call.1} parent=1 // pred_check_branch
      %2754 = sbr.rel (0) target = $region81
    $region80: #{tpu_custom_call.1} parent=1 // pred_region
      %2755 = dma.done [#allocation4], 2048
    $region81: #{tpu_custom_call.1} parent=1 // pred_fallthru
      _
    %2756 = vsyncpa [#allocation3], 1
    %2757 = vsyncpa [#allocation6], 1
    %2758 = vsyncpa [#allocation4], 1

</llo_original>
